<compile_context>
chip_gen: v6e
topology: v6e:2x2x1
jax: 0.10.0
libtpu: 0.0.40
codegen_flags: <defaults>
</compile_context>

<pallas_src>
import functools

import jax
import jax.numpy as jnp
from jax import lax
from jax.experimental import pallas as pl
from jax.experimental.pallas import tpu as pltpu


# ----------------------------------------------------------------------------
# Fused kernel: one batch element per grid step, all heads per step.
# ----------------------------------------------------------------------------
def _fused_cross_attention_kernel(x_ref, ctx_ref, wq_ref, wkv_ref, wo_ref,
                                  bo_ref, o_ref, acc_ref, *, heads, dim_head,
                                  scale):
    inner_dim = heads * dim_head
    x = x_ref[0]          # (n, query_dim)
    ctx = ctx_ref[0]      # (m, context_dim)

    # Projections (fused kv matmul). Pre-scale q: cheaper than scaling sim.
    q = jnp.dot(x, wq_ref[...], preferred_element_type=jnp.float32) * scale
    kv = jnp.dot(ctx, wkv_ref[...], preferred_element_type=jnp.float32)
    k = kv[:, :inner_dim]
    v = kv[:, inner_dim:]

    # Per-head attention, statically unrolled. Heads live as lane slices of
    # the (.., H*D) layout; results land lane-dense in the VMEM accumulator.
    for h in range(heads):
        lo = h * dim_head
        hi = lo + dim_head
        qh = q[:, lo:hi]                                            # (n, d)
        kh = k[:, lo:hi]                                            # (m, d)
        vh = v[:, lo:hi]                                            # (m, d)
        sim = lax.dot_general(qh, kh, (((1,), (1,)), ((), ())),
                              preferred_element_type=jnp.float32)   # (n, m)
        sim_max = jnp.max(sim, axis=-1, keepdims=True)
        p = jnp.exp(sim - sim_max)
        denom = jnp.sum(p, axis=-1, keepdims=True)
        oh = jnp.dot(p, vh, preferred_element_type=jnp.float32)     # (n, d)
        # Fold 1/denom into the (n, d) result instead of the (n, m) probs;
        # approx reciprocal runs on the otherwise-idle EUP slot.
        acc_ref[:, lo:hi] = oh * pl.reciprocal(denom, approx=True)

    # Output projection + bias.
    # TODO(synk): Dropout(0.3) in to_out omitted -- inference (identity) only.
    o_ref[0] = (jnp.dot(acc_ref[...], wo_ref[...],
                        preferred_element_type=jnp.float32) + bo_ref[...])


# ----------------------------------------------------------------------------
# Full CrossAttention.forward (single pallas_call)
# ----------------------------------------------------------------------------
def cross_attention_forward(x, params, context=None, *, heads):
    b, n, query_dim = x.shape
    context = x if context is None else context
    m, context_dim = context.shape[1], context.shape[2]
    inner_dim = params["wq"].shape[1]
    dim_head = inner_dim // heads
    scale = dim_head ** (-0.5)

    # Fuse k/v weights into one (context_dim, 2*inner_dim) matmul operand.
    wkv = jnp.concatenate([params["wk"], params["wv"]], axis=1)
    bo = params["bo"].reshape(1, query_dim)

    flops = 2 * b * (n * query_dim * inner_dim            # q projection
                     + m * context_dim * 2 * inner_dim    # fused k/v
                     + 2 * heads * n * m * dim_head       # sim + P.V
                     + n * inner_dim * query_dim)         # output projection
    transcendentals = b * heads * n * m
    bytes_accessed = 4 * (x.size + context.size + params["wq"].size
                          + int(wkv.size) + params["wo"].size + int(bo.size)
                          + b * n * query_dim)

    kernel = functools.partial(_fused_cross_attention_kernel,
                               heads=heads, dim_head=dim_head, scale=scale)

    return pl.pallas_call(
        kernel,
        out_shape=jax.ShapeDtypeStruct((b, n, query_dim), jnp.float32),
        grid=(b,),
        in_specs=[
            pl.BlockSpec((1, n, query_dim), lambda i: (i, 0, 0)),      # x
            pl.BlockSpec((1, m, context_dim), lambda i: (i, 0, 0)),    # context
            pl.BlockSpec((query_dim, inner_dim), lambda i: (0, 0)),    # wq
            pl.BlockSpec((context_dim, 2 * inner_dim), lambda i: (0, 0)),  # wkv
            pl.BlockSpec((inner_dim, query_dim), lambda i: (0, 0)),    # wo
            pl.BlockSpec((1, query_dim), lambda i: (0, 0)),            # bo
        ],
        out_specs=pl.BlockSpec((1, n, query_dim), lambda i: (i, 0, 0)),
        scratch_shapes=[pltpu.VMEM((n, inner_dim), jnp.float32)],
        compiler_params=pltpu.CompilerParams(
            dimension_semantics=("parallel",),
            vmem_limit_bytes=32 * 1024 * 1024,   # safe on v7x's 64 MiB VMEM
        ),
        cost_estimate=pl.CostEstimate(flops=flops,
                                      transcendentals=transcendentals,
                                      bytes_accessed=bytes_accessed),
    )(x, context, params["wq"], wkv, params["wo"], bo)


# ----------------------------------------------------------------------------
# Pure-JAX reference (mirrors the PyTorch module, inference mode)
# ----------------------------------------------------------------------------
def cross_attention_reference(x, params, context=None, *, heads):
    b, n, _ = x.shape
    context = x if context is None else context
    inner_dim = params["wq"].shape[1]
    d = inner_dim // heads
    scale = d ** (-0.5)

    q = x @ params["wq"]
    k = context @ params["wk"]
    v = context @ params["wv"]

    def split(t):
        bb, ll, _ = t.shape
        return t.reshape(bb, ll, heads, d).transpose(0, 2, 1, 3)

    qh, kh, vh = split(q), split(k), split(v)
    sim = jnp.einsum("bhid,bhjd->bhij", qh, kh) * scale
    attn = jax.nn.softmax(sim, axis=-1)
    out = jnp.einsum("bhij,bhjd->bhid", attn, vh)
    out = out.transpose(0, 2, 1, 3).reshape(b, n, inner_dim)
    return out @ params["wo"] + params["bo"]


# ----------------------------------------------------------------------------
# Deterministic parameter init + smoke test
# ----------------------------------------------------------------------------
def init_params(key, query_dim, context_dim, heads, dim_head):
    inner_dim = heads * dim_head
    k1, k2, k3, k4, k5 = jax.random.split(key, 5)
    scale_q = 1.0 / jnp.sqrt(query_dim)
    scale_c = 1.0 / jnp.sqrt(context_dim)
    scale_i = 1.0 / jnp.sqrt(inner_dim)
    return {
        # stored as (in_features, out_features): y = x @ w  (== x @ W.T in torch)
        "wq": jax.random.uniform(k1, (query_dim, inner_dim), jnp.float32, -scale_q, scale_q),
        "wk": jax.random.uniform(k2, (context_dim, inner_dim), jnp.float32, -scale_c, scale_c),
        "wv": jax.random.uniform(k3, (context_dim, inner_dim), jnp.float32, -scale_c, scale_c),
        "wo": jax.random.uniform(k4, (inner_dim, query_dim), jnp.float32, -scale_i, scale_i),
        "bo": jax.random.uniform(k5, (query_dim,), jnp.float32, -scale_i, scale_i),
    }


if __name__ == "__main__":
    key = jax.random.PRNGKey(0)
    k_params, k_x, k_ctx = jax.random.split(key, 3)

    batch, seq, ctx_seq = 2, 16, 8
    query_dim, context_dim = 32, 32
    heads, dim_head = 4, 8

    params = init_params(k_params, query_dim, context_dim, heads, dim_head)
    x = jax.random.normal(k_x, (batch, seq, query_dim), jnp.float32)
    context = jax.random.normal(k_ctx, (batch, ctx_seq, context_dim), jnp.float32)

    # self-attention path (context=None) and cross-attention path
    y_self = cross_attention_forward(x, params, None, heads=heads)
    y_cross = cross_attention_forward(x, params, context, heads=heads)
    jax.block_until_ready((y_self, y_cross))

    assert y_self.shape == (batch, seq, query_dim)
    assert y_cross.shape == (batch, seq, query_dim)

    # Numerical check against a pure-JAX reference (loose tol: approx recip).
    ref_self = cross_attention_reference(x, params, None, heads=heads)
    ref_cross = cross_attention_reference(x, params, context, heads=heads)
    assert jnp.allclose(y_self, ref_self, rtol=1e-2, atol=1e-2)
    assert jnp.allclose(y_cross, ref_cross, rtol=1e-2, atol=1e-2)

    print("KERNEL_OK")
</pallas_src>

<mosaic_0001>
module attributes {stable_mosaic.version = 11 : i64} {
  func.func @_fused_cross_attention_kernel(%arg0: i32, %arg1: memref<1x16x32xf32, #tpu.memory_space<vmem>>, %arg2: memref<1x16x32xf32, #tpu.memory_space<vmem>>, %arg3: memref<32x32xf32, #tpu.memory_space<vmem>>, %arg4: memref<32x64xf32, #tpu.memory_space<vmem>>, %arg5: memref<32x32xf32, #tpu.memory_space<vmem>>, %arg6: memref<1x32xf32, #tpu.memory_space<vmem>>, %arg7: memref<1x16x32xf32, #tpu.memory_space<vmem>>, %arg8: memref<16x32xf32, #tpu.memory_space<vmem>>) attributes {dimension_semantics = [#tpu.dimension_semantics<parallel>], iteration_bounds = array<i64: 2>, scalar_prefetch = 0 : i64, scratch_operands = 1 : i64, tpu.core_type = #tpu.core_type<tc>, window_params = [{transform_indices = @transform_0, window_bounds = array<i64: 1, 16, 32>}, {transform_indices = @transform_1, window_bounds = array<i64: 1, 16, 32>}, {pipeline_mode = #tpu.pipeline_mode<synchronous>, transform_indices = @transform_2, window_bounds = array<i64: 32, 32>}, {pipeline_mode = #tpu.pipeline_mode<synchronous>, transform_indices = @transform_3, window_bounds = array<i64: 32, 64>}, {pipeline_mode = #tpu.pipeline_mode<synchronous>, transform_indices = @transform_4, window_bounds = array<i64: 32, 32>}, {pipeline_mode = #tpu.pipeline_mode<synchronous>, transform_indices = @transform_5, window_bounds = array<i64: 1, 32>}, {transform_indices = @transform_6, window_bounds = array<i64: 1, 16, 32>}]} {
    %c0 = arith.constant 0 : index
    %c0_0 = arith.constant 0 : index
    %c0_1 = arith.constant 0 : index
    %0 = vector.load %arg1[%c0, %c0_0, %c0_1] : memref<1x16x32xf32, #tpu.memory_space<vmem>>, vector<1x16x32xf32>
    %1 = vector.shape_cast %0 : vector<1x16x32xf32> to vector<16x32xf32>
    %c0_2 = arith.constant 0 : index
    %c0_3 = arith.constant 0 : index
    %c0_4 = arith.constant 0 : index
    %2 = vector.load %arg2[%c0_2, %c0_3, %c0_4] : memref<1x16x32xf32, #tpu.memory_space<vmem>>, vector<1x16x32xf32>
    %3 = vector.shape_cast %2 : vector<1x16x32xf32> to vector<16x32xf32>
    %c0_5 = arith.constant 0 : index
    %c0_6 = arith.constant 0 : index
    %4 = vector.load %arg3[%c0_5, %c0_6] : memref<32x32xf32, #tpu.memory_space<vmem>>, vector<32x32xf32>
    %cst = arith.constant dense<0.000000e+00> : vector<16x32xf32>
    %5 = tpu.matmul %1, %4, %cst {dimension_numbers = #tpu.dot_dimension_numbers<[1], [0], [0], [1], [0, 0, 1, 1], [], []>} : vector<16x32xf32>, vector<32x32xf32>, vector<16x32xf32> -> vector<16x32xf32>
    %cst_7 = arith.constant 0.353553385 : f32
    %6 = vector.broadcast %cst_7 : f32 to vector<16x32xf32>
    %7 = arith.mulf %5, %6 : vector<16x32xf32>
    %c0_8 = arith.constant 0 : index
    %c0_9 = arith.constant 0 : index
    %8 = vector.load %arg4[%c0_8, %c0_9] : memref<32x64xf32, #tpu.memory_space<vmem>>, vector<32x64xf32>
    %cst_10 = arith.constant dense<0.000000e+00> : vector<16x64xf32>
    %9 = tpu.matmul %3, %8, %cst_10 {dimension_numbers = #tpu.dot_dimension_numbers<[1], [0], [0], [1], [0, 0, 1, 1], [], []>} : vector<16x32xf32>, vector<32x64xf32>, vector<16x64xf32> -> vector<16x64xf32>
    %10 = vector.extract_strided_slice %9 {offsets = [0, 0], sizes = [16, 32], strides = [1, 1]} : vector<16x64xf32> to vector<16x32xf32>
    %11 = vector.extract_strided_slice %9 {offsets = [0, 32], sizes = [16, 32], strides = [1, 1]} : vector<16x64xf32> to vector<16x32xf32>
    %12 = vector.extract_strided_slice %7 {offsets = [0, 0], sizes = [16, 8], strides = [1, 1]} : vector<16x32xf32> to vector<16x8xf32>
    %13 = vector.extract_strided_slice %10 {offsets = [0, 0], sizes = [16, 8], strides = [1, 1]} : vector<16x32xf32> to vector<16x8xf32>
    %14 = vector.extract_strided_slice %11 {offsets = [0, 0], sizes = [16, 8], strides = [1, 1]} : vector<16x32xf32> to vector<16x8xf32>
    %cst_11 = arith.constant dense<0.000000e+00> : vector<16x16xf32>
    %15 = tpu.matmul %12, %13, %cst_11 {dimension_numbers = #tpu.dot_dimension_numbers<[1], [1], [0], [0], [0, 0, 1, 0], [], []>} : vector<16x8xf32>, vector<16x8xf32>, vector<16x16xf32> -> vector<16x16xf32>
    %cst_12 = arith.constant dense<0xFF800000> : vector<16xf32>
    %16 = vector.multi_reduction <maximumf>, %15, %cst_12 [1] : vector<16x16xf32> to vector<16xf32>
    %17 = vector.shape_cast %16 : vector<16xf32> to vector<16x1xf32>
    %18 = vector.broadcast %17 : vector<16x1xf32> to vector<16x16xf32>
    %19 = arith.subf %15, %18 : vector<16x16xf32>
    %20 = math.exp %19 : vector<16x16xf32>
    %cst_13 = arith.constant dense<0.000000e+00> : vector<16xf32>
    %21 = vector.multi_reduction <add>, %20, %cst_13 [1] : vector<16x16xf32> to vector<16xf32>
    %22 = vector.shape_cast %21 : vector<16xf32> to vector<16x1xf32>
    %cst_14 = arith.constant dense<0.000000e+00> : vector<16x8xf32>
    %23 = tpu.matmul %20, %14, %cst_14 {dimension_numbers = #tpu.dot_dimension_numbers<[1], [0], [0], [1], [0, 0, 1, 1], [], []>} : vector<16x16xf32>, vector<16x8xf32>, vector<16x8xf32> -> vector<16x8xf32>
    %24 = tpu.reciprocal %22 {approx = true} : vector<16x1xf32> -> vector<16x1xf32>
    %25 = vector.broadcast %24 : vector<16x1xf32> to vector<16x8xf32>
    %26 = arith.mulf %23, %25 : vector<16x8xf32>
    %c0_15 = arith.constant 0 : index
    %c0_16 = arith.constant 0 : index
    %27 = vector.load %arg8[%c0_15, %c0_16] : memref<16x32xf32, #tpu.memory_space<vmem>>, vector<16x8xf32>
    tpu.vector_store %arg8[%c0_15, %c0_16], %26 {strides = array<i32>} : memref<16x32xf32, #tpu.memory_space<vmem>>, vector<16x8xf32>,
    %28 = vector.extract_strided_slice %7 {offsets = [0, 8], sizes = [16, 8], strides = [1, 1]} : vector<16x32xf32> to vector<16x8xf32>
    %29 = vector.extract_strided_slice %10 {offsets = [0, 8], sizes = [16, 8], strides = [1, 1]} : vector<16x32xf32> to vector<16x8xf32>
    %30 = vector.extract_strided_slice %11 {offsets = [0, 8], sizes = [16, 8], strides = [1, 1]} : vector<16x32xf32> to vector<16x8xf32>
    %cst_17 = arith.constant dense<0.000000e+00> : vector<16x16xf32>
    %31 = tpu.matmul %28, %29, %cst_17 {dimension_numbers = #tpu.dot_dimension_numbers<[1], [1], [0], [0], [0, 0, 1, 0], [], []>} : vector<16x8xf32>, vector<16x8xf32>, vector<16x16xf32> -> vector<16x16xf32>
    %cst_18 = arith.constant dense<0xFF800000> : vector<16xf32>
    %32 = vector.multi_reduction <maximumf>, %31, %cst_18 [1] : vector<16x16xf32> to vector<16xf32>
    %33 = vector.shape_cast %32 : vector<16xf32> to vector<16x1xf32>
    %34 = vector.broadcast %33 : vector<16x1xf32> to vector<16x16xf32>
    %35 = arith.subf %31, %34 : vector<16x16xf32>
    %36 = math.exp %35 : vector<16x16xf32>
    %cst_19 = arith.constant dense<0.000000e+00> : vector<16xf32>
    %37 = vector.multi_reduction <add>, %36, %cst_19 [1] : vector<16x16xf32> to vector<16xf32>
    %38 = vector.shape_cast %37 : vector<16xf32> to vector<16x1xf32>
    %cst_20 = arith.constant dense<0.000000e+00> : vector<16x8xf32>
    %39 = tpu.matmul %36, %30, %cst_20 {dimension_numbers = #tpu.dot_dimension_numbers<[1], [0], [0], [1], [0, 0, 1, 1], [], []>} : vector<16x16xf32>, vector<16x8xf32>, vector<16x8xf32> -> vector<16x8xf32>
    %40 = tpu.reciprocal %38 {approx = true} : vector<16x1xf32> -> vector<16x1xf32>
    %41 = vector.broadcast %40 : vector<16x1xf32> to vector<16x8xf32>
    %42 = arith.mulf %39, %41 : vector<16x8xf32>
    %c0_21 = arith.constant 0 : index
    %c8 = arith.constant 8 : index
    %43 = vector.load %arg8[%c0_21, %c8] : memref<16x32xf32, #tpu.memory_space<vmem>>, vector<16x8xf32>
    tpu.vector_store %arg8[%c0_21, %c8], %42 {strides = array<i32>} : memref<16x32xf32, #tpu.memory_space<vmem>>, vector<16x8xf32>,
    %44 = vector.extract_strided_slice %7 {offsets = [0, 16], sizes = [16, 8], strides = [1, 1]} : vector<16x32xf32> to vector<16x8xf32>
    %45 = vector.extract_strided_slice %10 {offsets = [0, 16], sizes = [16, 8], strides = [1, 1]} : vector<16x32xf32> to vector<16x8xf32>
    %46 = vector.extract_strided_slice %11 {offsets = [0, 16], sizes = [16, 8], strides = [1, 1]} : vector<16x32xf32> to vector<16x8xf32>
    %cst_22 = arith.constant dense<0.000000e+00> : vector<16x16xf32>
    %47 = tpu.matmul %44, %45, %cst_22 {dimension_numbers = #tpu.dot_dimension_numbers<[1], [1], [0], [0], [0, 0, 1, 0], [], []>} : vector<16x8xf32>, vector<16x8xf32>, vector<16x16xf32> -> vector<16x16xf32>
    %cst_23 = arith.constant dense<0xFF800000> : vector<16xf32>
    %48 = vector.multi_reduction <maximumf>, %47, %cst_23 [1] : vector<16x16xf32> to vector<16xf32>
    %49 = vector.shape_cast %48 : vector<16xf32> to vector<16x1xf32>
    %50 = vector.broadcast %49 : vector<16x1xf32> to vector<16x16xf32>
    %51 = arith.subf %47, %50 : vector<16x16xf32>
    %52 = math.exp %51 : vector<16x16xf32>
    %cst_24 = arith.constant dense<0.000000e+00> : vector<16xf32>
    %53 = vector.multi_reduction <add>, %52, %cst_24 [1] : vector<16x16xf32> to vector<16xf32>
    %54 = vector.shape_cast %53 : vector<16xf32> to vector<16x1xf32>
    %cst_25 = arith.constant dense<0.000000e+00> : vector<16x8xf32>
    %55 = tpu.matmul %52, %46, %cst_25 {dimension_numbers = #tpu.dot_dimension_numbers<[1], [0], [0], [1], [0, 0, 1, 1], [], []>} : vector<16x16xf32>, vector<16x8xf32>, vector<16x8xf32> -> vector<16x8xf32>
    %56 = tpu.reciprocal %54 {approx = true} : vector<16x1xf32> -> vector<16x1xf32>
    %57 = vector.broadcast %56 : vector<16x1xf32> to vector<16x8xf32>
    %58 = arith.mulf %55, %57 : vector<16x8xf32>
    %c0_26 = arith.constant 0 : index
    %c16 = arith.constant 16 : index
    %59 = vector.load %arg8[%c0_26, %c16] : memref<16x32xf32, #tpu.memory_space<vmem>>, vector<16x8xf32>
    tpu.vector_store %arg8[%c0_26, %c16], %58 {strides = array<i32>} : memref<16x32xf32, #tpu.memory_space<vmem>>, vector<16x8xf32>,
    %60 = vector.extract_strided_slice %7 {offsets = [0, 24], sizes = [16, 8], strides = [1, 1]} : vector<16x32xf32> to vector<16x8xf32>
    %61 = vector.extract_strided_slice %10 {offsets = [0, 24], sizes = [16, 8], strides = [1, 1]} : vector<16x32xf32> to vector<16x8xf32>
    %62 = vector.extract_strided_slice %11 {offsets = [0, 24], sizes = [16, 8], strides = [1, 1]} : vector<16x32xf32> to vector<16x8xf32>
    %cst_27 = arith.constant dense<0.000000e+00> : vector<16x16xf32>
    %63 = tpu.matmul %60, %61, %cst_27 {dimension_numbers = #tpu.dot_dimension_numbers<[1], [1], [0], [0], [0, 0, 1, 0], [], []>} : vector<16x8xf32>, vector<16x8xf32>, vector<16x16xf32> -> vector<16x16xf32>
    %cst_28 = arith.constant dense<0xFF800000> : vector<16xf32>
    %64 = vector.multi_reduction <maximumf>, %63, %cst_28 [1] : vector<16x16xf32> to vector<16xf32>
    %65 = vector.shape_cast %64 : vector<16xf32> to vector<16x1xf32>
    %66 = vector.broadcast %65 : vector<16x1xf32> to vector<16x16xf32>
    %67 = arith.subf %63, %66 : vector<16x16xf32>
    %68 = math.exp %67 : vector<16x16xf32>
    %cst_29 = arith.constant dense<0.000000e+00> : vector<16xf32>
    %69 = vector.multi_reduction <add>, %68, %cst_29 [1] : vector<16x16xf32> to vector<16xf32>
    %70 = vector.shape_cast %69 : vector<16xf32> to vector<16x1xf32>
    %cst_30 = arith.constant dense<0.000000e+00> : vector<16x8xf32>
    %71 = tpu.matmul %68, %62, %cst_30 {dimension_numbers = #tpu.dot_dimension_numbers<[1], [0], [0], [1], [0, 0, 1, 1], [], []>} : vector<16x16xf32>, vector<16x8xf32>, vector<16x8xf32> -> vector<16x8xf32>
    %72 = tpu.reciprocal %70 {approx = true} : vector<16x1xf32> -> vector<16x1xf32>
    %73 = vector.broadcast %72 : vector<16x1xf32> to vector<16x8xf32>
    %74 = arith.mulf %71, %73 : vector<16x8xf32>
    %c0_31 = arith.constant 0 : index
    %c24 = arith.constant 24 : index
    %75 = vector.load %arg8[%c0_31, %c24] : memref<16x32xf32, #tpu.memory_space<vmem>>, vector<16x8xf32>
    tpu.vector_store %arg8[%c0_31, %c24], %74 {strides = array<i32>} : memref<16x32xf32, #tpu.memory_space<vmem>>, vector<16x8xf32>,
    %c0_32 = arith.constant 0 : index
    %c0_33 = arith.constant 0 : index
    %76 = vector.load %arg8[%c0_32, %c0_33] : memref<16x32xf32, #tpu.memory_space<vmem>>, vector<16x32xf32>
    %c0_34 = arith.constant 0 : index
    %c0_35 = arith.constant 0 : index
    %77 = vector.load %arg5[%c0_34, %c0_35] : memref<32x32xf32, #tpu.memory_space<vmem>>, vector<32x32xf32>
    %cst_36 = arith.constant dense<0.000000e+00> : vector<16x32xf32>
    %78 = tpu.matmul %76, %77, %cst_36 {dimension_numbers = #tpu.dot_dimension_numbers<[1], [0], [0], [1], [0, 0, 1, 1], [], []>} : vector<16x32xf32>, vector<32x32xf32>, vector<16x32xf32> -> vector<16x32xf32>
    %c0_37 = arith.constant 0 : index
    %c0_38 = arith.constant 0 : index
    %79 = vector.load %arg6[%c0_37, %c0_38] : memref<1x32xf32, #tpu.memory_space<vmem>>, vector<1x32xf32>
    %80 = vector.broadcast %79 : vector<1x32xf32> to vector<16x32xf32>
    %81 = arith.addf %78, %80 : vector<16x32xf32>
    %c0_39 = arith.constant 0 : index
    %c0_40 = arith.constant 0 : index
    %c0_41 = arith.constant 0 : index
    %82 = vector.load %arg7[%c0_39, %c0_40, %c0_41] : memref<1x16x32xf32, #tpu.memory_space<vmem>>, vector<1x16x32xf32>
    %83 = vector.shape_cast %82 : vector<1x16x32xf32> to vector<16x32xf32>
    %84 = vector.shape_cast %81 : vector<16x32xf32> to vector<1x16x32xf32>
    tpu.vector_store %arg7[%c0_39, %c0_40, %c0_41], %84 {strides = array<i32>} : memref<1x16x32xf32, #tpu.memory_space<vmem>>, vector<1x16x32xf32>,
    return
  }
  func.func @transform_0(%arg0: i32) -> (i32, i32, i32) {
    %c0_i32 = arith.constant 0 : i32
    %c0_i32_0 = arith.constant 0 : i32
    %c0_i32_1 = arith.constant 0 : i32
    return %arg0, %c0_i32, %c0_i32_0 : i32, i32, i32
  }
  func.func @transform_1(%arg0: i32) -> (i32, i32, i32) {
    %c0_i32 = arith.constant 0 : i32
    %c0_i32_0 = arith.constant 0 : i32
    %c0_i32_1 = arith.constant 0 : i32
    return %arg0, %c0_i32, %c0_i32_0 : i32, i32, i32
  }
  func.func @transform_2(%arg0: i32) -> (i32, i32) {
    %c0_i32 = arith.constant 0 : i32
    %c0_i32_0 = arith.constant 0 : i32
    %c0_i32_1 = arith.constant 0 : i32
    return %c0_i32, %c0_i32_0 : i32, i32
  }
  func.func @transform_3(%arg0: i32) -> (i32, i32) {
    %c0_i32 = arith.constant 0 : i32
    %c0_i32_0 = arith.constant 0 : i32
    %c0_i32_1 = arith.constant 0 : i32
    return %c0_i32, %c0_i32_0 : i32, i32
  }
  func.func @transform_4(%arg0: i32) -> (i32, i32) {
    %c0_i32 = arith.constant 0 : i32
    %c0_i32_0 = arith.constant 0 : i32
    %c0_i32_1 = arith.constant 0 : i32
    return %c0_i32, %c0_i32_0 : i32, i32
  }
  func.func @transform_5(%arg0: i32) -> (i32, i32) {
    %c0_i32 = arith.constant 0 : i32
    %c0_i32_0 = arith.constant 0 : i32
    %c0_i32_1 = arith.constant 0 : i32
    return %c0_i32, %c0_i32_0 : i32, i32
  }
  func.func @transform_6(%arg0: i32) -> (i32, i32, i32) {
    %c0_i32 = arith.constant 0 : i32
    %c0_i32_0 = arith.constant 0 : i32
    %c0_i32_1 = arith.constant 0 : i32
    return %arg0, %c0_i32, %c0_i32_0 : i32, i32, i32
  }
}

</mosaic_0001>

<llo_original>
// kernel: tpu_custom_call.1
$region0: #{tpu_custom_call.1}
  #allocation0 [shape = 'u32[]', space=smem, size = 0x4, offset = 0x4, fixed_abs, tag = 'smem constant byte address 0x4 - core index']
  #allocation1 [shape = 'u32[144,128]{1,0:T(1,128)}', space=vmem, size = 0x12000, scoped, tag = 'internal scratch']
  #allocation2 [shape = 'f32[16,32]{1,0:T(8,128)}', space=vmem, size = 0x2000, scoped, tag = 'scratch operand']
  %s0 = inlined_call_operand.hbm [shape: f32[2,16,32], index: 0, kind: input, shape index: {}]
  %s1 = inlined_call_operand.hbm [shape: f32[2,16,32], index: 1, kind: input, shape index: {}]
  %s2 = inlined_call_operand.hbm [shape: f32[32,32], index: 2, kind: input, shape index: {}]
  %s3 = inlined_call_operand.hbm [shape: f32[32,64], index: 3, kind: input, shape index: {}]
  %s4 = inlined_call_operand.hbm [shape: f32[32,32], index: 4, kind: input, shape index: {}]
  %s5 = inlined_call_operand.vmem [shape: f32[1,32], index: 5, kind: input, shape index: {}]
  %s6 = inlined_call_operand.hbm [shape: f32[2,16,32], index: 6, kind: output, shape index: {}]
  %s7 = sld [smem:[#allocation0]]
  $region77: #{tpu_custom_call.1} parent=0
    _
  %s9 = ssub.s32 1, %s7
  %s10 = scalar_select 0, %s9, %s7
  $region1: #{tpu_custom_call.1} parent=0
    #allocation3 [shape = 'u8[16384]{0}', space=vmem, size = 0x4000, scoped, tag = 'input window, operand 0']
    #allocation4 [shape = 's32[2]{0}', space=sflag, size = 0x8, scoped, tag = 'scoped memory for tpu_custom_call.1']
    #allocation5 [shape = 's32[2]{0}', space=sflag, size = 0x8, scoped, tag = 'scoped memory for tpu_custom_call.1']
    #allocation6 [shape = 'u8[16384]{0}', space=vmem, size = 0x4000, scoped, tag = 'input window, operand 1']
    #allocation7 [shape = 's32[2]{0}', space=sflag, size = 0x8, scoped, tag = 'scoped memory for tpu_custom_call.1']
    #allocation8 [shape = 'u8[16384]{0}', space=vmem, size = 0x4000, scoped, tag = 'input window, operand 2, single buffered']
    #allocation9 [shape = 'u8[16384]{0}', space=vmem, size = 0x4000, scoped, tag = 'input window, operand 3, single buffered']
    #allocation10 [shape = 's32[1]{0}', space=sflag, size = 0x4, scoped, tag = 'scoped memory for tpu_custom_call.1']
    #allocation11 [shape = 'u8[16384]{0}', space=vmem, size = 0x4000, scoped, tag = 'input window, operand 4, single buffered']
    #allocation12 [shape = 'u8[16384]{0}', space=vmem, size = 0x4000, scoped, tag = 'output window, operand 0']
    %11 = vsyncpa [#allocation4], 0
    %s12 = scalar_lea.sflag [#allocation4], 1
    %13 = vsyncpa %s12, 0
    %14 = vsyncpa [#allocation7], 0
    %s15 = scalar_lea.sflag [#allocation7], 1
    %16 = vsyncpa %s15, 0
    %17 = vsyncpa [#allocation10], 0
    %18 = vsyncpa [#allocation5], 0
    %s19 = scalar_lea.sflag [#allocation5], 1
    %20 = vsyncpa %s19, 0
    loop: start=0, step=1, limit=4
    $region2: #{tpu_custom_call.1} parent=1 // loop_pre_header
      _
    $region3: #{tpu_custom_call.1} parent=1 // loop_header
      %s22 = sphi 0, %s26
      %p23 = scmp.ge.s32.totalorder %s22, 4
      %s32 = sphi 0, %s34
      %s35 = sphi 0, %s32
      %s36 = sphi 0, %s35
      %s52 = sphi 0, %s36
      %s58 = sphi 0, %s60
      %s61 = sphi 0, %s58
      %s62 = sphi 0, %s61
      %s78 = sphi 0, %s62
      %s82 = sphi 0, %s82
      %s84 = sphi 0, %s82
      %s85 = sphi 0, %s84
      %s99 = sphi 0, %s85
      %s103 = sphi 0, %s103
      %s105 = sphi 0, %s103
      %s106 = sphi 0, %s105
      %s120 = sphi 0, %s106
      %s124 = sphi 0, %s124
      %s126 = sphi 0, %s124
      %s127 = sphi 0, %s126
      %s141 = sphi 0, %s127
      %s145 = sphi 0, %s145
      %s147 = sphi 0, %s145
      %s148 = sphi 0, %s147
      %s162 = sphi 0, %s148
      %s168 = sphi 0, %s170
      %s171 = sphi 0, %s168
      %s172 = sphi 0, %s171
      %s188 = sphi 0, %s172
    $region4: #{tpu_custom_call.1} parent=1 // loop_header_branch
      %25 = sbr.rel (%p23) target = $region8
    $region5: #{tpu_custom_call.1} parent=1 // loop_body
      %s27 = ssub.s32 %s22, 1
      %s28 = ssub.s32 %s22, 2
      %s29 = sadd.s32 %s22, 1
      %s30 = ssub.s32 %s22, %s29
      %p31 = scmp.eq.s32.totalorder %s30, 0
      %s33 = sadd.s32 %s32, 1
      %s34 = scalar_select %p31, %s32, %s33
      %p37 = pneg %p31
      %p38 = scmp.eq.s32.totalorder %s22, 1
      %p39 = por %p37, %p38
      %p40 = scmp.ne.s32.totalorder %s32, %s35
      %p41 = scmp.eq.s32.totalorder %s22, 0
      %p42 = por %p40, %p41
      %p43 = scmp.ne.s32.totalorder %s32, %s35
      %p44 = scmp.eq.s32.totalorder %s27, 1
      %p45 = por %p43, %p44
      %p46 = scmp.ne.s32.totalorder %s35, %s36
      %p47 = scmp.eq.s32.totalorder %s27, 0
      %p48 = por %p46, %p47
      %p49 = scmp.ne.s32.totalorder %s35, %s36
      %p50 = scmp.eq.s32.totalorder %s28, 1
      %p51 = por %p49, %p50
      %p53 = scmp.ne.s32.totalorder %s36, %s52
      %p54 = scmp.eq.s32.totalorder %s28, 0
      %p55 = por %p53, %p54
      %s56 = ssub.s32 %s22, %s29
      %p57 = scmp.eq.s32.totalorder %s56, 0
      %s59 = sadd.s32 %s58, 1
      %s60 = scalar_select %p57, %s58, %s59
      %p63 = pneg %p57
      %p64 = scmp.eq.s32.totalorder %s22, 1
      %p65 = por %p63, %p64
      %p66 = scmp.ne.s32.totalorder %s58, %s61
      %p67 = scmp.eq.s32.totalorder %s22, 0
      %p68 = por %p66, %p67
      %p69 = scmp.ne.s32.totalorder %s58, %s61
      %p70 = scmp.eq.s32.totalorder %s27, 1
      %p71 = por %p69, %p70
      %p72 = scmp.ne.s32.totalorder %s61, %s62
      %p73 = scmp.eq.s32.totalorder %s27, 0
      %p74 = por %p72, %p73
      %p75 = scmp.ne.s32.totalorder %s61, %s62
      %p76 = scmp.eq.s32.totalorder %s28, 1
      %p77 = por %p75, %p76
      %p79 = scmp.ne.s32.totalorder %s62, %s78
      %p80 = scmp.eq.s32.totalorder %s28, 0
      %p81 = por %p79, %p80
      %s83 = sadd.s32 %s82, 1
      %p86 = scmp.eq.s32.totalorder %s22, 1
      %p87 = scmp.ne.s32.totalorder %s82, %s84
      %p88 = scmp.eq.s32.totalorder %s22, 0
      %p89 = por %p87, %p88
      %p90 = scmp.ne.s32.totalorder %s82, %s84
      %p91 = scmp.eq.s32.totalorder %s27, 1
      %p92 = por %p90, %p91
      %p93 = scmp.ne.s32.totalorder %s84, %s85
      %p94 = scmp.eq.s32.totalorder %s27, 0
      %p95 = por %p93, %p94
      %p96 = scmp.ne.s32.totalorder %s84, %s85
      %p97 = scmp.eq.s32.totalorder %s28, 1
      %p98 = por %p96, %p97
      %p100 = scmp.ne.s32.totalorder %s85, %s99
      %p101 = scmp.eq.s32.totalorder %s28, 0
      %p102 = por %p100, %p101
      %s104 = sadd.s32 %s103, 1
      %p107 = scmp.eq.s32.totalorder %s22, 1
      %p108 = scmp.ne.s32.totalorder %s103, %s105
      %p109 = scmp.eq.s32.totalorder %s22, 0
      %p110 = por %p108, %p109
      %p111 = scmp.ne.s32.totalorder %s103, %s105
      %p112 = scmp.eq.s32.totalorder %s27, 1
      %p113 = por %p111, %p112
      %p114 = scmp.ne.s32.totalorder %s105, %s106
      %p115 = scmp.eq.s32.totalorder %s27, 0
      %p116 = por %p114, %p115
      %p117 = scmp.ne.s32.totalorder %s105, %s106
      %p118 = scmp.eq.s32.totalorder %s28, 1
      %p119 = por %p117, %p118
      %p121 = scmp.ne.s32.totalorder %s106, %s120
      %p122 = scmp.eq.s32.totalorder %s28, 0
      %p123 = por %p121, %p122
      %s125 = sadd.s32 %s124, 1
      %p128 = scmp.eq.s32.totalorder %s22, 1
      %p129 = scmp.ne.s32.totalorder %s124, %s126
      %p130 = scmp.eq.s32.totalorder %s22, 0
      %p131 = por %p129, %p130
      %p132 = scmp.ne.s32.totalorder %s124, %s126
      %p133 = scmp.eq.s32.totalorder %s27, 1
      %p134 = por %p132, %p133
      %p135 = scmp.ne.s32.totalorder %s126, %s127
      %p136 = scmp.eq.s32.totalorder %s27, 0
      %p137 = por %p135, %p136
      %p138 = scmp.ne.s32.totalorder %s126, %s127
      %p139 = scmp.eq.s32.totalorder %s28, 1
      %p140 = por %p138, %p139
      %p142 = scmp.ne.s32.totalorder %s127, %s141
      %p143 = scmp.eq.s32.totalorder %s28, 0
      %p144 = por %p142, %p143
      %s146 = sadd.s32 %s145, 1
      %p149 = scmp.eq.s32.totalorder %s22, 1
      %p150 = scmp.ne.s32.totalorder %s145, %s147
      %p151 = scmp.eq.s32.totalorder %s22, 0
      %p152 = por %p150, %p151
      %p153 = scmp.ne.s32.totalorder %s145, %s147
      %p154 = scmp.eq.s32.totalorder %s27, 1
      %p155 = por %p153, %p154
      %p156 = scmp.ne.s32.totalorder %s147, %s148
      %p157 = scmp.eq.s32.totalorder %s27, 0
      %p158 = por %p156, %p157
      %p159 = scmp.ne.s32.totalorder %s147, %s148
      %p160 = scmp.eq.s32.totalorder %s28, 1
      %p161 = por %p159, %p160
      %p163 = scmp.ne.s32.totalorder %s148, %s162
      %p164 = scmp.eq.s32.totalorder %s28, 0
      %p165 = por %p163, %p164
      %s166 = ssub.s32 %s22, %s29
      %p167 = scmp.eq.s32.totalorder %s166, 0
      %s169 = sadd.s32 %s168, 1
      %s170 = scalar_select %p167, %s168, %s169
      %p173 = pneg %p167
      %p174 = scmp.eq.s32.totalorder %s22, 1
      %p175 = por %p173, %p174
      %p176 = scmp.ne.s32.totalorder %s168, %s171
      %p177 = scmp.eq.s32.totalorder %s22, 0
      %p178 = por %p176, %p177
      %p179 = scmp.ne.s32.totalorder %s168, %s171
      %p180 = scmp.eq.s32.totalorder %s27, 1
      %p181 = por %p179, %p180
      %p182 = scmp.ne.s32.totalorder %s171, %s172
      %p183 = scmp.eq.s32.totalorder %s27, 0
      %p184 = por %p182, %p183
      %p185 = scmp.ne.s32.totalorder %s171, %s172
      %p186 = scmp.eq.s32.totalorder %s28, 1
      %p187 = por %p185, %p186
      %p189 = scmp.ne.s32.totalorder %s172, %s188
      %p190 = scmp.eq.s32.totalorder %s28, 0
      %p191 = por %p189, %p190
      %p192 = scmp.le.s32.totalorder 1, %s22
      %p193 = scmp.lt.s32.totalorder %s22, 3
      %p194 = pnand %p192, %p193
      %p195 = pneg %p194
      // Predicated region
      $region9: #{tpu_custom_call.1} parent=5 // pred_check
        _
      $region10: #{tpu_custom_call.1} parent=5 // pred_check_branch
        %197 = sbr.rel (%p194) target = $region12
      $region11: #{tpu_custom_call.1} parent=5 // pred_region
        %s198 = ssub.s32 %s22, 1
        // Predicated region
        $region13: #{tpu_custom_call.1} parent=11 // pred_check
          %p199 = pneg %p95
        $region14: #{tpu_custom_call.1} parent=11 // pred_check_branch
          %201 = sbr.rel (%p199) target = $region16
        $region15: #{tpu_custom_call.1} parent=11 // pred_region
          %s203 = ssub.s32 512, 512
          %204 = vsyncadd [#allocation7], %s203
          %s205 = sshll.u32 [#allocation8], 4
          %s206 = int_to_ptr.vmem [resolvable:$true] %s205
          %211 = dma.hbm_to_vmem [thread:$0]  %s2, 512, %s206, [#allocation7], 128, 128, 8
        $region16: #{tpu_custom_call.1} parent=11 // pred_fallthru
          _
        // Predicated region
        $region17: #{tpu_custom_call.1} parent=11 // pred_check
          %p212 = pneg %p116
        $region18: #{tpu_custom_call.1} parent=11 // pred_check_branch
          %214 = sbr.rel (%p212) target = $region20
        $region19: #{tpu_custom_call.1} parent=11 // pred_region
          %s216 = ssub.s32 512, 512
          %217 = vsyncadd [#allocation10], %s216
          %s218 = sshll.u32 [#allocation9], 4
          %s219 = int_to_ptr.vmem [resolvable:$true] %s218
          %224 = dma.hbm_to_vmem [thread:$0]  %s3, 512, %s219, [#allocation10], 128, 128, 8
        $region20: #{tpu_custom_call.1} parent=11 // pred_fallthru
          _
        // Predicated region
        $region21: #{tpu_custom_call.1} parent=11 // pred_check
          %p225 = pneg %p137
        $region22: #{tpu_custom_call.1} parent=11 // pred_check_branch
          %227 = sbr.rel (%p225) target = $region24
        $region23: #{tpu_custom_call.1} parent=11 // pred_region
          %s229 = ssub.s32 512, 512
          %230 = vsyncadd [#allocation10], %s229
          %s231 = sshll.u32 [#allocation11], 4
          %s232 = int_to_ptr.vmem [resolvable:$true] %s231
          %237 = dma.hbm_to_vmem [thread:$0]  %s4, 512, %s232, [#allocation10], 128, 128, 8
        $region24: #{tpu_custom_call.1} parent=11 // pred_fallthru
          _
        // Predicated region
        $region25: #{tpu_custom_call.1} parent=11 // pred_check
          %p238 = pneg %p158
        $region26: #{tpu_custom_call.1} parent=11 // pred_check_branch
          %240 = sbr.rel (%p238) target = $region28
        $region27: #{tpu_custom_call.1} parent=11 // pred_region
          _
        $region28: #{tpu_custom_call.1} parent=11 // pred_fallthru
          _
      $region12: #{tpu_custom_call.1} parent=5 // pred_fallthru
        _
      %p241 = scmp.lt.s32.totalorder %s22, 2
      // Predicated region
      $region29: #{tpu_custom_call.1} parent=5 // pred_check
        %p242 = pneg %p241
      $region30: #{tpu_custom_call.1} parent=5 // pred_check_branch
        %244 = sbr.rel (%p242) target = $region32
      $region31: #{tpu_custom_call.1} parent=5 // pred_region
        // Predicated region
        $region33: #{tpu_custom_call.1} parent=31 // pred_check
          %p245 = pneg %p42
        $region34: #{tpu_custom_call.1} parent=31 // pred_check_branch
          %247 = sbr.rel (%p245) target = $region36
        $region35: #{tpu_custom_call.1} parent=31 // pred_region
          %s248 = sand.u32 %s32, 1
          %s249 = scalar_lea.sflag [#allocation4], %s248
          %s250 = sand.u32 %s32, 1
          %s251 = smul.addr %s250, 16
          %s252 = scalar_lea.vmem [#allocation3], %s251
          %s254 = ssub.s32 256, 256
          %255 = vsyncadd %s249, %s254
          %s256 = smul.addr %s22, 2
          %s257 = smul.addr %s256, 128
          %s258 = scalar_lea.hbm %s0, %s257
          %s259 = sshll.u32 %s252, 4
          %s260 = int_to_ptr.vmem [resolvable:$true] %s259
          %265 = dma.hbm_to_vmem [thread:$0]  %s258, 256, %s260, %s249, 128, 128, 8
        $region36: #{tpu_custom_call.1} parent=31 // pred_fallthru
          _
        // Predicated region
        $region37: #{tpu_custom_call.1} parent=31 // pred_check
          %p266 = pneg %p68
        $region38: #{tpu_custom_call.1} parent=31 // pred_check_branch
          %268 = sbr.rel (%p266) target = $region40
        $region39: #{tpu_custom_call.1} parent=31 // pred_region
          %s269 = sand.u32 %s22, 1
          %s270 = scalar_lea.sflag [#allocation7], %s269
          %s271 = sand.u32 %s58, 1
          %s272 = smul.addr %s271, 16
          %s273 = scalar_lea.vmem [#allocation6], %s272
          %s275 = ssub.s32 256, 256
          %276 = vsyncadd %s270, %s275
          %s277 = smul.addr %s22, 2
          %s278 = smul.addr %s277, 128
          %s279 = scalar_lea.hbm %s1, %s278
          %s280 = sshll.u32 %s273, 4
          %s281 = int_to_ptr.vmem [resolvable:$true] %s280
          %286 = dma.hbm_to_vmem [thread:$0]  %s279, 256, %s281, %s270, 128, 128, 8
        $region40: #{tpu_custom_call.1} parent=31 // pred_fallthru
          _
      $region32: #{tpu_custom_call.1} parent=5 // pred_fallthru
        _
      %p287 = scmp.le.s32.totalorder 1, %s22
      %p288 = scmp.lt.s32.totalorder %s22, 3
      %p289 = pnand %p287, %p288
      %p290 = pneg %p289
      // Predicated region
      $region41: #{tpu_custom_call.1} parent=5 // pred_check
        _
      $region42: #{tpu_custom_call.1} parent=5 // pred_check_branch
        %292 = sbr.rel (%p289) target = $region44
      $region43: #{tpu_custom_call.1} parent=5 // pred_region
        %s293 = ssub.s32 %s22, 1
        %s294 = sand.u32 %s35, 1
        %s295 = scalar_lea.sflag [#allocation4], %s294
        %s296 = sand.u32 %s35, 1
        %s297 = smul.addr %s296, 16
        %s298 = scalar_lea.vmem [#allocation3], %s297
        // Predicated region
        $region45: #{tpu_custom_call.1} parent=43 // pred_check
          %p299 = pneg %p48
        $region46: #{tpu_custom_call.1} parent=43 // pred_check_branch
          %301 = sbr.rel (%p299) target = $region48
        $region47: #{tpu_custom_call.1} parent=43 // pred_region
          %302 = dma.done %s295, 256
        $region48: #{tpu_custom_call.1} parent=43 // pred_fallthru
          _
        %s303 = sand.u32 %s27, 1
        %s304 = scalar_lea.sflag [#allocation7], %s303
        %s305 = sand.u32 %s61, 1
        %s306 = smul.addr %s305, 16
        %s307 = scalar_lea.vmem [#allocation6], %s306
        // Predicated region
        $region49: #{tpu_custom_call.1} parent=43 // pred_check
          %p308 = pneg %p74
        $region50: #{tpu_custom_call.1} parent=43 // pred_check_branch
          %310 = sbr.rel (%p308) target = $region52
        $region51: #{tpu_custom_call.1} parent=43 // pred_region
          %311 = dma.done %s304, 256
        $region52: #{tpu_custom_call.1} parent=43 // pred_fallthru
          _
        // Predicated region
        $region53: #{tpu_custom_call.1} parent=43 // pred_check
          %p312 = pneg %p95
        $region54: #{tpu_custom_call.1} parent=43 // pred_check_branch
          %314 = sbr.rel (%p312) target = $region56
        $region55: #{tpu_custom_call.1} parent=43 // pred_region
          %315 = dma.done [#allocation7], 512
        $region56: #{tpu_custom_call.1} parent=43 // pred_fallthru
          _
        // Predicated region
        $region57: #{tpu_custom_call.1} parent=43 // pred_check
          %p316 = pneg %p116
        $region58: #{tpu_custom_call.1} parent=43 // pred_check_branch
          %318 = sbr.rel (%p316) target = $region60
        $region59: #{tpu_custom_call.1} parent=43 // pred_region
          %319 = dma.done [#allocation10], 512
        $region60: #{tpu_custom_call.1} parent=43 // pred_fallthru
          _
        // Predicated region
        $region61: #{tpu_custom_call.1} parent=43 // pred_check
          %p320 = pneg %p137
        $region62: #{tpu_custom_call.1} parent=43 // pred_check_branch
          %322 = sbr.rel (%p320) target = $region64
        $region63: #{tpu_custom_call.1} parent=43 // pred_region
          %323 = dma.done [#allocation10], 512
        $region64: #{tpu_custom_call.1} parent=43 // pred_fallthru
          _
        %s324 = sand.u32 %s35, 1
        %s325 = scalar_lea.sflag [#allocation4], %s324
        %s326 = sand.u32 %s35, 1
        %s327 = smul.addr %s326, 16
        %s328 = scalar_lea.vmem [#allocation3], %s327
        %p329 = pneg %p48
        %p330 = pneg %p45
        %s331 = sand.u32 %s27, 1
        %s332 = scalar_lea.sflag [#allocation7], %s331
        %s333 = sand.u32 %s61, 1
        %s334 = smul.addr %s333, 16
        %s335 = scalar_lea.vmem [#allocation6], %s334
        %p336 = pneg %p74
        %p337 = pneg %p71
        %p338 = pneg %p95
        %p339 = pneg %p92
        %p340 = pneg %p116
        %p341 = pneg %p113
        %p342 = pneg %p137
        %p343 = pneg %p134
        %p344 = pneg %p158
        %p345 = pneg %p155
        %p346 = pneg %p184
        %p347 = pneg %p181
        %s348 = sand.u32 %s171, 1
        %s349 = scalar_lea.sflag [#allocation5], %s348
        %s350 = sand.u32 %s171, 1
        %s351 = smul.addr %s350, 16
        %s352 = scalar_lea.vmem [#allocation12], %s351
        %v353 = vld [vmem:[%s298] sm:$0xff]
        %v354 = vld [vmem:[%s298 + $0x8] sm:$0xff]
        %v355 = vld [vmem:[%s307] sm:$0xff]
        %v356 = vld [vmem:[%s307 + $0x8] sm:$0xff]
        %v357 = vld [vmem:[#allocation8] sm:$0xff]
        %v358 = vld [vmem:[#allocation8 + $0x8] sm:$0xff]
        %v359 = vld [vmem:[#allocation8 + $0x10] sm:$0xff]
        %v360 = vld [vmem:[#allocation8 + $0x18] sm:$0xff]
        %vm361 = vcmask 261120
        %v363 = vsel %vm361, %v353, 0
        %v366 = vsel %vm361, %v354, 0
        %368 = vmatprep.subr.mxu0 0.0
        %369 = vmatpush1.msra.mxu0 0.0
        %370 = vmatprep.subr.mxu0 0.0
        %371 = vmatpush1.msra.mxu0 0.0
        %372 = vmatprep.subr.mxu0 0.0
        %373 = vmatpush1.msra.mxu0 0.0
        %374 = vmatprep.subr.mxu0 0.0
        %375 = vmatpush1.msra.mxu0 0.0
        %376 = vmatprep.subr.mxu0 0.0
        %377 = vmatpush1.msra.mxu0 0.0
        %378 = vmatprep.subr.mxu0 0.0
        %379 = vmatpush1.msra.mxu0 0.0
        %380 = vmatprep.subr.mxu0 0.0
        %381 = vmatpush1.msra.mxu0 0.0
        %382 = vmatprep.subr.mxu0 0.0
        %383 = vmatpush1.msra.mxu0 0.0
        %384 = vmatprep.subr.mxu0 0.0
        %385 = vmatpush1.msra.mxu0 0.0
        %386 = vmatprep.subr.mxu0 0.0
        %387 = vmatpush1.msra.mxu0 0.0
        %388 = vmatprep.subr.mxu0 0.0
        %389 = vmatpush1.msra.mxu0 0.0
        %390 = vmatprep.subr.mxu0 0.0
        %391 = vmatpush1.msra.mxu0 0.0
        %392 = vmatprep.subr.mxu0 0.0
        %393 = vmatpush1.msra.mxu0 %v360
        %394 = vmatprep.subr.mxu0 0.0
        %395 = vmatpush1.msra.mxu0 %v359
        %396 = vmatprep.subr.mxu0 0.0
        %397 = vmatpush1.msra.mxu0 %v358
        %398 = vmatprep.subr.mxu0 0.0
        %399 = vmatpush1.msra.mxu0 %v357
        %400 = vmatprep.subr.mxu0 0.0
        %401 = vmatpush2.msra.mxu0 0.0
        %402 = vmatprep.subr.mxu0 0.0
        %403 = vmatpush2.msra.mxu0 0.0
        %404 = vmatprep.subr.mxu0 0.0
        %405 = vmatpush2.msra.mxu0 0.0
        %406 = vmatprep.subr.mxu0 0.0
        %407 = vmatpush2.msra.mxu0 0.0
        %408 = vmatprep.subr.mxu0 0.0
        %409 = vmatpush2.msra.mxu0 0.0
        %410 = vmatprep.subr.mxu0 0.0
        %411 = vmatpush2.msra.mxu0 0.0
        %412 = vmatprep.subr.mxu0 0.0
        %413 = vmatpush2.msra.mxu0 0.0
        %414 = vmatprep.subr.mxu0 0.0
        %415 = vmatpush2.msra.mxu0 0.0
        %416 = vmatprep.subr.mxu0 0.0
        %417 = vmatpush2.msra.mxu0 0.0
        %418 = vmatprep.subr.mxu0 0.0
        %419 = vmatpush2.msra.mxu0 0.0
        %420 = vmatprep.subr.mxu0 0.0
        %421 = vmatpush2.msra.mxu0 0.0
        %422 = vmatprep.subr.mxu0 0.0
        %423 = vmatpush2.msra.mxu0 0.0
        %424 = vmatprep.subr.mxu0 0.0
        %425 = vmatpush2.msra.mxu0 0.0
        %426 = vmatprep.subr.mxu0 0.0
        %427 = vmatpush2.msra.mxu0 0.0
        %428 = vmatprep.subr.mxu0 0.0
        %429 = vmatpush2.msra.mxu0 0.0
        %430 = vmatprep.subr.mxu0 0.0
        %431 = vmatpush2.msra.mxu0 0.0
        %432 = vmatprep.mubr.f32.mxu0 0.0
        %433 = vmatmul.mubr.f32.gmra.mxu0 %v363
        %v434 = vpop.f32.mrf.mxu0
        %v435 = vadd.f32 0.0, %v434
        %v436 = vpop.f32.mrf.mxu0
        %437 = vmatprep.mubr.f32.mxu0 0.0
        %438 = vmatmul.mubr.f32.gmra.mxu0 %v366
        %v439 = vpop.f32.mrf.mxu0
        %v440 = vadd.f32 0.0, %v439
        %v441 = vpop.f32.mrf.mxu0
        %442 = vdwg.mxu0
        %v443 = vmul.f32 %v435, 0.35355338
        %v444 = vmul.f32 %v440, 0.35355338
        %v445 = vld [vmem:[#allocation9] sm:$0xff]
        %v446 = vld [vmem:[#allocation9 + $0x8] sm:$0xff]
        %v447 = vld [vmem:[#allocation9 + $0x10] sm:$0xff]
        %v448 = vld [vmem:[#allocation9 + $0x18] sm:$0xff]
        %v450 = vsel %vm361, %v355, 0
        %v453 = vsel %vm361, %v356, 0
        %455 = vmatprep.subr.mxu0 0.0
        %456 = vmatpush1.msra.mxu0 0.0
        %457 = vmatprep.subr.mxu0 0.0
        %458 = vmatpush1.msra.mxu0 0.0
        %459 = vmatprep.subr.mxu0 0.0
        %460 = vmatpush1.msra.mxu0 0.0
        %461 = vmatprep.subr.mxu0 0.0
        %462 = vmatpush1.msra.mxu0 0.0
        %463 = vmatprep.subr.mxu0 0.0
        %464 = vmatpush1.msra.mxu0 0.0
        %465 = vmatprep.subr.mxu0 0.0
        %466 = vmatpush1.msra.mxu0 0.0
        %467 = vmatprep.subr.mxu0 0.0
        %468 = vmatpush1.msra.mxu0 0.0
        %469 = vmatprep.subr.mxu0 0.0
        %470 = vmatpush1.msra.mxu0 0.0
        %471 = vmatprep.subr.mxu0 0.0
        %472 = vmatpush1.msra.mxu0 0.0
        %473 = vmatprep.subr.mxu0 0.0
        %474 = vmatpush1.msra.mxu0 0.0
        %475 = vmatprep.subr.mxu0 0.0
        %476 = vmatpush1.msra.mxu0 0.0
        %477 = vmatprep.subr.mxu0 0.0
        %478 = vmatpush1.msra.mxu0 0.0
        %479 = vmatprep.subr.mxu0 0.0
        %480 = vmatpush1.msra.mxu0 %v448
        %481 = vmatprep.subr.mxu0 0.0
        %482 = vmatpush1.msra.mxu0 %v447
        %483 = vmatprep.subr.mxu0 0.0
        %484 = vmatpush1.msra.mxu0 %v446
        %485 = vmatprep.subr.mxu0 0.0
        %486 = vmatpush1.msra.mxu0 %v445
        %487 = vmatprep.subr.mxu0 0.0
        %488 = vmatpush2.msra.mxu0 0.0
        %489 = vmatprep.subr.mxu0 0.0
        %490 = vmatpush2.msra.mxu0 0.0
        %491 = vmatprep.subr.mxu0 0.0
        %492 = vmatpush2.msra.mxu0 0.0
        %493 = vmatprep.subr.mxu0 0.0
        %494 = vmatpush2.msra.mxu0 0.0
        %495 = vmatprep.subr.mxu0 0.0
        %496 = vmatpush2.msra.mxu0 0.0
        %497 = vmatprep.subr.mxu0 0.0
        %498 = vmatpush2.msra.mxu0 0.0
        %499 = vmatprep.subr.mxu0 0.0
        %500 = vmatpush2.msra.mxu0 0.0
        %501 = vmatprep.subr.mxu0 0.0
        %502 = vmatpush2.msra.mxu0 0.0
        %503 = vmatprep.subr.mxu0 0.0
        %504 = vmatpush2.msra.mxu0 0.0
        %505 = vmatprep.subr.mxu0 0.0
        %506 = vmatpush2.msra.mxu0 0.0
        %507 = vmatprep.subr.mxu0 0.0
        %508 = vmatpush2.msra.mxu0 0.0
        %509 = vmatprep.subr.mxu0 0.0
        %510 = vmatpush2.msra.mxu0 0.0
        %511 = vmatprep.subr.mxu0 0.0
        %512 = vmatpush2.msra.mxu0 0.0
        %513 = vmatprep.subr.mxu0 0.0
        %514 = vmatpush2.msra.mxu0 0.0
        %515 = vmatprep.subr.mxu0 0.0
        %516 = vmatpush2.msra.mxu0 0.0
        %517 = vmatprep.subr.mxu0 0.0
        %518 = vmatpush2.msra.mxu0 0.0
        %519 = vmatprep.mubr.f32.mxu0 0.0
        %520 = vmatmul.mubr.f32.gmra.mxu0 %v450
        %v521 = vpop.f32.mrf.mxu0
        %v522 = vadd.f32 0.0, %v521
        %v523 = vpop.f32.mrf.mxu0
        %524 = vmatprep.mubr.f32.mxu0 0.0
        %525 = vmatmul.mubr.f32.gmra.mxu0 %v453
        %v526 = vpop.f32.mrf.mxu0
        %v527 = vadd.f32 0.0, %v526
        %v528 = vpop.f32.mrf.mxu0
        %529 = vdwg.mxu0
        %vm530 = vcmask 64512
        %v532 = vsel %vm530, %v443, 0
        %v535 = vsel %vm530, %v444, 0
        %v538 = vsel %vm530, %v522, 0
        %v541 = vsel %vm530, %v527, 0
        %543 = vmatprep.subr.mxu0 0.0
        %544 = vmatpush1.xpose.msra.mxu0 0.0
        %545 = vmatprep.subr.mxu0 0.0
        %546 = vmatpush1.xpose.msra.mxu0 0.0
        %547 = vmatprep.subr.mxu0 0.0
        %548 = vmatpush1.xpose.msra.mxu0 0.0
        %549 = vmatprep.subr.mxu0 0.0
        %550 = vmatpush1.xpose.msra.mxu0 0.0
        %551 = vmatprep.subr.mxu0 0.0
        %552 = vmatpush1.xpose.msra.mxu0 0.0
        %553 = vmatprep.subr.mxu0 0.0
        %554 = vmatpush1.xpose.msra.mxu0 0.0
        %555 = vmatprep.subr.mxu0 0.0
        %556 = vmatpush1.xpose.msra.mxu0 0.0
        %557 = vmatprep.subr.mxu0 0.0
        %558 = vmatpush1.xpose.msra.mxu0 0.0
        %559 = vmatprep.subr.mxu0 0.0
        %560 = vmatpush1.xpose.msra.mxu0 0.0
        %561 = vmatprep.subr.mxu0 0.0
        %562 = vmatpush1.xpose.msra.mxu0 0.0
        %563 = vmatprep.subr.mxu0 0.0
        %564 = vmatpush1.xpose.msra.mxu0 0.0
        %565 = vmatprep.subr.mxu0 0.0
        %566 = vmatpush1.xpose.msra.mxu0 0.0
        %567 = vmatprep.subr.mxu0 0.0
        %568 = vmatpush1.xpose.msra.mxu0 0.0
        %569 = vmatprep.subr.mxu0 0.0
        %570 = vmatpush1.xpose.msra.mxu0 0.0
        %571 = vmatprep.subr.mxu0 0.0
        %572 = vmatpush1.xpose.msra.mxu0 %v541
        %573 = vmatprep.subr.mxu0 0.0
        %574 = vmatpush1.xpose.msra.mxu0 %v538
        %575 = vmatprep.subr.mxu0 0.0
        %576 = vmatpush2.xpose.msra.mxu0 0.0
        %577 = vmatprep.subr.mxu0 0.0
        %578 = vmatpush2.xpose.msra.mxu0 0.0
        %579 = vmatprep.subr.mxu0 0.0
        %580 = vmatpush2.xpose.msra.mxu0 0.0
        %581 = vmatprep.subr.mxu0 0.0
        %582 = vmatpush2.xpose.msra.mxu0 0.0
        %583 = vmatprep.subr.mxu0 0.0
        %584 = vmatpush2.xpose.msra.mxu0 0.0
        %585 = vmatprep.subr.mxu0 0.0
        %586 = vmatpush2.xpose.msra.mxu0 0.0
        %587 = vmatprep.subr.mxu0 0.0
        %588 = vmatpush2.xpose.msra.mxu0 0.0
        %589 = vmatprep.subr.mxu0 0.0
        %590 = vmatpush2.xpose.msra.mxu0 0.0
        %591 = vmatprep.subr.mxu0 0.0
        %592 = vmatpush2.xpose.msra.mxu0 0.0
        %593 = vmatprep.subr.mxu0 0.0
        %594 = vmatpush2.xpose.msra.mxu0 0.0
        %595 = vmatprep.subr.mxu0 0.0
        %596 = vmatpush2.xpose.msra.mxu0 0.0
        %597 = vmatprep.subr.mxu0 0.0
        %598 = vmatpush2.xpose.msra.mxu0 0.0
        %599 = vmatprep.subr.mxu0 0.0
        %600 = vmatpush2.xpose.msra.mxu0 0.0
        %601 = vmatprep.subr.mxu0 0.0
        %602 = vmatpush2.xpose.msra.mxu0 0.0
        %603 = vmatprep.subr.mxu0 0.0
        %604 = vmatpush2.xpose.msra.mxu0 0.0
        %605 = vmatprep.subr.mxu0 0.0
        %606 = vmatpush2.xpose.msra.mxu0 0.0
        %607 = vmatprep.mubr.f32.mxu0 0.0
        %608 = vmatmul.mubr.f32.gmra.mxu0 %v532
        %v609 = vpop.f32.mrf.mxu0
        %v610 = vadd.f32 0.0, %v609
        %v611 = vpop.f32.mrf.mxu0
        %612 = vmatprep.mubr.f32.mxu0 0.0
        %613 = vmatmul.mubr.f32.gmra.mxu0 %v535
        %v614 = vpop.f32.mrf.mxu0
        %v615 = vadd.f32 0.0, %v614
        %v616 = vpop.f32.mrf.mxu0
        %617 = vdwg.mxu0
        %vm618 = vcmask 130048
        %v619 = vsel %vm618, %v610, -inf
        %620 = vmax.xlane.f32.xlu0 %v619
        %v621 = vpop.xlane.xlu0 %620
        %v622 = vsel %vm618, %v615, -inf
        %623 = vmax.xlane.f32.xlu0 %v622
        %v624 = vpop.xlane.xlu0 %623
        %v625 = vsub.f32 %v610, %v621
        %v626 = vsub.f32 %v615, %v624
        %v627 = vmul.f32 %v625, 1.442695
        %v628 = vpow.pop %v627
        %v629 = vmul.f32 %v626, 1.442695
        %v630 = vpow.pop %v629
        %v631 = vsel %vm618, %v628, 0.0
        %632 = vadd.xlane.f32.xlu0 %v631
        %v633 = vpop.xlane.xlu0 %632
        %v634 = vsel %vm618, %v630, 0.0
        %635 = vadd.xlane.f32.xlu0 %v634
        %v636 = vpop.xlane.xlu0 %635
        %637 = vrot.lane.b32.xlu0 %v522, 96
        %v638 = vpop.permute.xlu0 %637
        %639 = vrot.lane.b32.xlu0 %v527, 96
        %v640 = vpop.permute.xlu0 %639
        %v644 = vsel %vm618, %v628, 0
        %v647 = vsel %vm618, %v630, 0
        %649 = vmatprep.subr.mxu0 0.0
        %650 = vmatpush1.msra.mxu0 0.0
        %651 = vmatprep.subr.mxu0 0.0
        %652 = vmatpush1.msra.mxu0 0.0
        %653 = vmatprep.subr.mxu0 0.0
        %654 = vmatpush1.msra.mxu0 0.0
        %655 = vmatprep.subr.mxu0 0.0
        %656 = vmatpush1.msra.mxu0 0.0
        %657 = vmatprep.subr.mxu0 0.0
        %658 = vmatpush1.msra.mxu0 0.0
        %659 = vmatprep.subr.mxu0 0.0
        %660 = vmatpush1.msra.mxu0 0.0
        %661 = vmatprep.subr.mxu0 0.0
        %662 = vmatpush1.msra.mxu0 0.0
        %663 = vmatprep.subr.mxu0 0.0
        %664 = vmatpush1.msra.mxu0 0.0
        %665 = vmatprep.subr.mxu0 0.0
        %666 = vmatpush1.msra.mxu0 0.0
        %667 = vmatprep.subr.mxu0 0.0
        %668 = vmatpush1.msra.mxu0 0.0
        %669 = vmatprep.subr.mxu0 0.0
        %670 = vmatpush1.msra.mxu0 0.0
        %671 = vmatprep.subr.mxu0 0.0
        %672 = vmatpush1.msra.mxu0 0.0
        %673 = vmatprep.subr.mxu0 0.0
        %674 = vmatpush1.msra.mxu0 0.0
        %675 = vmatprep.subr.mxu0 0.0
        %676 = vmatpush1.msra.mxu0 0.0
        %677 = vmatprep.subr.mxu0 0.0
        %678 = vmatpush1.msra.mxu0 %v640
        %679 = vmatprep.subr.mxu0 0.0
        %680 = vmatpush1.msra.mxu0 %v638
        %681 = vmatprep.subr.mxu0 0.0
        %682 = vmatpush2.msra.mxu0 0.0
        %683 = vmatprep.subr.mxu0 0.0
        %684 = vmatpush2.msra.mxu0 0.0
        %685 = vmatprep.subr.mxu0 0.0
        %686 = vmatpush2.msra.mxu0 0.0
        %687 = vmatprep.subr.mxu0 0.0
        %688 = vmatpush2.msra.mxu0 0.0
        %689 = vmatprep.subr.mxu0 0.0
        %690 = vmatpush2.msra.mxu0 0.0
        %691 = vmatprep.subr.mxu0 0.0
        %692 = vmatpush2.msra.mxu0 0.0
        %693 = vmatprep.subr.mxu0 0.0
        %694 = vmatpush2.msra.mxu0 0.0
        %695 = vmatprep.subr.mxu0 0.0
        %696 = vmatpush2.msra.mxu0 0.0
        %697 = vmatprep.subr.mxu0 0.0
        %698 = vmatpush2.msra.mxu0 0.0
        %699 = vmatprep.subr.mxu0 0.0
        %700 = vmatpush2.msra.mxu0 0.0
        %701 = vmatprep.subr.mxu0 0.0
        %702 = vmatpush2.msra.mxu0 0.0
        %703 = vmatprep.subr.mxu0 0.0
        %704 = vmatpush2.msra.mxu0 0.0
        %705 = vmatprep.subr.mxu0 0.0
        %706 = vmatpush2.msra.mxu0 0.0
        %707 = vmatprep.subr.mxu0 0.0
        %708 = vmatpush2.msra.mxu0 0.0
        %709 = vmatprep.subr.mxu0 0.0
        %710 = vmatpush2.msra.mxu0 0.0
        %711 = vmatprep.subr.mxu0 0.0
        %712 = vmatpush2.msra.mxu0 0.0
        %713 = vmatprep.mubr.f32.mxu0 0.0
        %714 = vmatmul.mubr.f32.gmra.mxu0 %v644
        %v715 = vpop.f32.mrf.mxu0
        %v716 = vadd.f32 0.0, %v715
        %v717 = vpop.f32.mrf.mxu0
        %718 = vmatprep.mubr.f32.mxu0 0.0
        %719 = vmatmul.mubr.f32.gmra.mxu0 %v647
        %v720 = vpop.f32.mrf.mxu0
        %v721 = vadd.f32 0.0, %v720
        %v722 = vpop.f32.mrf.mxu0
        %723 = vdwg.mxu0
        %v724 = vrcp.pop %v633
        %v725 = vrcp.pop %v636
        %v726 = vmul.f32 %v716, %v724
        %v727 = vmul.f32 %v721, %v725
        %728 = vst.msk [vmem:[#allocation2] sm:$0xff] %vm530, %v726
        %729 = vst.msk [vmem:[#allocation2 + $0x8] sm:$0xff] %vm530, %v727
        %730 = vrot.lane.b32.xlu0 %v443, 120
        %v731 = vpop.permute.xlu0 %730
        %732 = vrot.lane.b32.xlu0 %v444, 120
        %v733 = vpop.permute.xlu0 %732
        %734 = vrot.lane.b32.xlu0 %v522, 120
        %v735 = vpop.permute.xlu0 %734
        %736 = vrot.lane.b32.xlu0 %v527, 120
        %v737 = vpop.permute.xlu0 %736
        %v738 = vsel %vm530, %v731, 0
        %v740 = vsel %vm530, %v733, 0
        %v742 = vsel %vm530, %v735, 0
        %v744 = vsel %vm530, %v737, 0
        %746 = vmatprep.subr.mxu0 0.0
        %747 = vmatpush1.xpose.msra.mxu0 0.0
        %748 = vmatprep.subr.mxu0 0.0
        %749 = vmatpush1.xpose.msra.mxu0 0.0
        %750 = vmatprep.subr.mxu0 0.0
        %751 = vmatpush1.xpose.msra.mxu0 0.0
        %752 = vmatprep.subr.mxu0 0.0
        %753 = vmatpush1.xpose.msra.mxu0 0.0
        %754 = vmatprep.subr.mxu0 0.0
        %755 = vmatpush1.xpose.msra.mxu0 0.0
        %756 = vmatprep.subr.mxu0 0.0
        %757 = vmatpush1.xpose.msra.mxu0 0.0
        %758 = vmatprep.subr.mxu0 0.0
        %759 = vmatpush1.xpose.msra.mxu0 0.0
        %760 = vmatprep.subr.mxu0 0.0
        %761 = vmatpush1.xpose.msra.mxu0 0.0
        %762 = vmatprep.subr.mxu0 0.0
        %763 = vmatpush1.xpose.msra.mxu0 0.0
        %764 = vmatprep.subr.mxu0 0.0
        %765 = vmatpush1.xpose.msra.mxu0 0.0
        %766 = vmatprep.subr.mxu0 0.0
        %767 = vmatpush1.xpose.msra.mxu0 0.0
        %768 = vmatprep.subr.mxu0 0.0
        %769 = vmatpush1.xpose.msra.mxu0 0.0
        %770 = vmatprep.subr.mxu0 0.0
        %771 = vmatpush1.xpose.msra.mxu0 0.0
        %772 = vmatprep.subr.mxu0 0.0
        %773 = vmatpush1.xpose.msra.mxu0 0.0
        %774 = vmatprep.subr.mxu0 0.0
        %775 = vmatpush1.xpose.msra.mxu0 %v744
        %776 = vmatprep.subr.mxu0 0.0
        %777 = vmatpush1.xpose.msra.mxu0 %v742
        %778 = vmatprep.subr.mxu0 0.0
        %779 = vmatpush2.xpose.msra.mxu0 0.0
        %780 = vmatprep.subr.mxu0 0.0
        %781 = vmatpush2.xpose.msra.mxu0 0.0
        %782 = vmatprep.subr.mxu0 0.0
        %783 = vmatpush2.xpose.msra.mxu0 0.0
        %784 = vmatprep.subr.mxu0 0.0
        %785 = vmatpush2.xpose.msra.mxu0 0.0
        %786 = vmatprep.subr.mxu0 0.0
        %787 = vmatpush2.xpose.msra.mxu0 0.0
        %788 = vmatprep.subr.mxu0 0.0
        %789 = vmatpush2.xpose.msra.mxu0 0.0
        %790 = vmatprep.subr.mxu0 0.0
        %791 = vmatpush2.xpose.msra.mxu0 0.0
        %792 = vmatprep.subr.mxu0 0.0
        %793 = vmatpush2.xpose.msra.mxu0 0.0
        %794 = vmatprep.subr.mxu0 0.0
        %795 = vmatpush2.xpose.msra.mxu0 0.0
        %796 = vmatprep.subr.mxu0 0.0
        %797 = vmatpush2.xpose.msra.mxu0 0.0
        %798 = vmatprep.subr.mxu0 0.0
        %799 = vmatpush2.xpose.msra.mxu0 0.0
        %800 = vmatprep.subr.mxu0 0.0
        %801 = vmatpush2.xpose.msra.mxu0 0.0
        %802 = vmatprep.subr.mxu0 0.0
        %803 = vmatpush2.xpose.msra.mxu0 0.0
        %804 = vmatprep.subr.mxu0 0.0
        %805 = vmatpush2.xpose.msra.mxu0 0.0
        %806 = vmatprep.subr.mxu0 0.0
        %807 = vmatpush2.xpose.msra.mxu0 0.0
        %808 = vmatprep.subr.mxu0 0.0
        %809 = vmatpush2.xpose.msra.mxu0 0.0
        %810 = vmatprep.mubr.f32.mxu0 0.0
        %811 = vmatmul.mubr.f32.gmra.mxu0 %v738
        %v812 = vpop.f32.mrf.mxu0
        %v813 = vadd.f32 0.0, %v812
        %v814 = vpop.f32.mrf.mxu0
        %815 = vmatprep.mubr.f32.mxu0 0.0
        %816 = vmatmul.mubr.f32.gmra.mxu0 %v740
        %v817 = vpop.f32.mrf.mxu0
        %v818 = vadd.f32 0.0, %v817
        %v819 = vpop.f32.mrf.mxu0
        %820 = vdwg.mxu0
        %v821 = vsel %vm618, %v813, -inf
        %822 = vmax.xlane.f32.xlu0 %v821
        %v823 = vpop.xlane.xlu0 %822
        %v824 = vsel %vm618, %v818, -inf
        %825 = vmax.xlane.f32.xlu0 %v824
        %v826 = vpop.xlane.xlu0 %825
        %v827 = vsub.f32 %v813, %v823
        %v828 = vsub.f32 %v818, %v826
        %v829 = vmul.f32 %v827, 1.442695
        %v830 = vpow.pop %v829
        %v831 = vmul.f32 %v828, 1.442695
        %v832 = vpow.pop %v831
        %v833 = vsel %vm618, %v830, 0.0
        %834 = vadd.xlane.f32.xlu0 %v833
        %v835 = vpop.xlane.xlu0 %834
        %v836 = vsel %vm618, %v832, 0.0
        %837 = vadd.xlane.f32.xlu0 %v836
        %v838 = vpop.xlane.xlu0 %837
        %839 = vrot.lane.b32.xlu0 %v522, 88
        %v840 = vpop.permute.xlu0 %839
        %841 = vrot.lane.b32.xlu0 %v527, 88
        %v842 = vpop.permute.xlu0 %841
        %v846 = vsel %vm618, %v830, 0
        %v849 = vsel %vm618, %v832, 0
        %851 = vmatprep.subr.mxu0 0.0
        %852 = vmatpush1.msra.mxu0 0.0
        %853 = vmatprep.subr.mxu0 0.0
        %854 = vmatpush1.msra.mxu0 0.0
        %855 = vmatprep.subr.mxu0 0.0
        %856 = vmatpush1.msra.mxu0 0.0
        %857 = vmatprep.subr.mxu0 0.0
        %858 = vmatpush1.msra.mxu0 0.0
        %859 = vmatprep.subr.mxu0 0.0
        %860 = vmatpush1.msra.mxu0 0.0
        %861 = vmatprep.subr.mxu0 0.0
        %862 = vmatpush1.msra.mxu0 0.0
        %863 = vmatprep.subr.mxu0 0.0
        %864 = vmatpush1.msra.mxu0 0.0
        %865 = vmatprep.subr.mxu0 0.0
        %866 = vmatpush1.msra.mxu0 0.0
        %867 = vmatprep.subr.mxu0 0.0
        %868 = vmatpush1.msra.mxu0 0.0
        %869 = vmatprep.subr.mxu0 0.0
        %870 = vmatpush1.msra.mxu0 0.0
        %871 = vmatprep.subr.mxu0 0.0
        %872 = vmatpush1.msra.mxu0 0.0
        %873 = vmatprep.subr.mxu0 0.0
        %874 = vmatpush1.msra.mxu0 0.0
        %875 = vmatprep.subr.mxu0 0.0
        %876 = vmatpush1.msra.mxu0 0.0
        %877 = vmatprep.subr.mxu0 0.0
        %878 = vmatpush1.msra.mxu0 0.0
        %879 = vmatprep.subr.mxu0 0.0
        %880 = vmatpush1.msra.mxu0 %v842
        %881 = vmatprep.subr.mxu0 0.0
        %882 = vmatpush1.msra.mxu0 %v840
        %883 = vmatprep.subr.mxu0 0.0
        %884 = vmatpush2.msra.mxu0 0.0
        %885 = vmatprep.subr.mxu0 0.0
        %886 = vmatpush2.msra.mxu0 0.0
        %887 = vmatprep.subr.mxu0 0.0
        %888 = vmatpush2.msra.mxu0 0.0
        %889 = vmatprep.subr.mxu0 0.0
        %890 = vmatpush2.msra.mxu0 0.0
        %891 = vmatprep.subr.mxu0 0.0
        %892 = vmatpush2.msra.mxu0 0.0
        %893 = vmatprep.subr.mxu0 0.0
        %894 = vmatpush2.msra.mxu0 0.0
        %895 = vmatprep.subr.mxu0 0.0
        %896 = vmatpush2.msra.mxu0 0.0
        %897 = vmatprep.subr.mxu0 0.0
        %898 = vmatpush2.msra.mxu0 0.0
        %899 = vmatprep.subr.mxu0 0.0
        %900 = vmatpush2.msra.mxu0 0.0
        %901 = vmatprep.subr.mxu0 0.0
        %902 = vmatpush2.msra.mxu0 0.0
        %903 = vmatprep.subr.mxu0 0.0
        %904 = vmatpush2.msra.mxu0 0.0
        %905 = vmatprep.subr.mxu0 0.0
        %906 = vmatpush2.msra.mxu0 0.0
        %907 = vmatprep.subr.mxu0 0.0
        %908 = vmatpush2.msra.mxu0 0.0
        %909 = vmatprep.subr.mxu0 0.0
        %910 = vmatpush2.msra.mxu0 0.0
        %911 = vmatprep.subr.mxu0 0.0
        %912 = vmatpush2.msra.mxu0 0.0
        %913 = vmatprep.subr.mxu0 0.0
        %914 = vmatpush2.msra.mxu0 0.0
        %915 = vmatprep.mubr.f32.mxu0 0.0
        %916 = vmatmul.mubr.f32.gmra.mxu0 %v846
        %v917 = vpop.f32.mrf.mxu0
        %v918 = vadd.f32 0.0, %v917
        %v919 = vpop.f32.mrf.mxu0
        %920 = vmatprep.mubr.f32.mxu0 0.0
        %921 = vmatmul.mubr.f32.gmra.mxu0 %v849
        %v922 = vpop.f32.mrf.mxu0
        %v923 = vadd.f32 0.0, %v922
        %v924 = vpop.f32.mrf.mxu0
        %925 = vdwg.mxu0
        %v926 = vrcp.pop %v835
        %v927 = vrcp.pop %v838
        %v928 = vmul.f32 %v918, %v926
        %v929 = vmul.f32 %v923, %v927
        %932 = vrot.lane.b32.xlu0 %v928, 8
        %v933 = vpop.permute.xlu0 %932
        %934 = vrot.lane.b32.xlu0 %v929, 8
        %v935 = vpop.permute.xlu0 %934
        %vm938 = vcmask 130112
        %939 = vst.msk [vmem:[#allocation2] sm:$0xff] %vm938, %v933
        %940 = vst.msk [vmem:[#allocation2 + $0x8] sm:$0xff] %vm938, %v935
        %941 = vrot.lane.b32.xlu0 %v443, 112
        %v942 = vpop.permute.xlu0 %941
        %943 = vrot.lane.b32.xlu0 %v444, 112
        %v944 = vpop.permute.xlu0 %943
        %945 = vrot.lane.b32.xlu0 %v522, 112
        %v946 = vpop.permute.xlu0 %945
        %947 = vrot.lane.b32.xlu0 %v527, 112
        %v948 = vpop.permute.xlu0 %947
        %v949 = vsel %vm530, %v942, 0
        %v951 = vsel %vm530, %v944, 0
        %v953 = vsel %vm530, %v946, 0
        %v955 = vsel %vm530, %v948, 0
        %957 = vmatprep.subr.mxu0 0.0
        %958 = vmatpush1.xpose.msra.mxu0 0.0
        %959 = vmatprep.subr.mxu0 0.0
        %960 = vmatpush1.xpose.msra.mxu0 0.0
        %961 = vmatprep.subr.mxu0 0.0
        %962 = vmatpush1.xpose.msra.mxu0 0.0
        %963 = vmatprep.subr.mxu0 0.0
        %964 = vmatpush1.xpose.msra.mxu0 0.0
        %965 = vmatprep.subr.mxu0 0.0
        %966 = vmatpush1.xpose.msra.mxu0 0.0
        %967 = vmatprep.subr.mxu0 0.0
        %968 = vmatpush1.xpose.msra.mxu0 0.0
        %969 = vmatprep.subr.mxu0 0.0
        %970 = vmatpush1.xpose.msra.mxu0 0.0
        %971 = vmatprep.subr.mxu0 0.0
        %972 = vmatpush1.xpose.msra.mxu0 0.0
        %973 = vmatprep.subr.mxu0 0.0
        %974 = vmatpush1.xpose.msra.mxu0 0.0
        %975 = vmatprep.subr.mxu0 0.0
        %976 = vmatpush1.xpose.msra.mxu0 0.0
        %977 = vmatprep.subr.mxu0 0.0
        %978 = vmatpush1.xpose.msra.mxu0 0.0
        %979 = vmatprep.subr.mxu0 0.0
        %980 = vmatpush1.xpose.msra.mxu0 0.0
        %981 = vmatprep.subr.mxu0 0.0
        %982 = vmatpush1.xpose.msra.mxu0 0.0
        %983 = vmatprep.subr.mxu0 0.0
        %984 = vmatpush1.xpose.msra.mxu0 0.0
        %985 = vmatprep.subr.mxu0 0.0
        %986 = vmatpush1.xpose.msra.mxu0 %v955
        %987 = vmatprep.subr.mxu0 0.0
        %988 = vmatpush1.xpose.msra.mxu0 %v953
        %989 = vmatprep.subr.mxu0 0.0
        %990 = vmatpush2.xpose.msra.mxu0 0.0
        %991 = vmatprep.subr.mxu0 0.0
        %992 = vmatpush2.xpose.msra.mxu0 0.0
        %993 = vmatprep.subr.mxu0 0.0
        %994 = vmatpush2.xpose.msra.mxu0 0.0
        %995 = vmatprep.subr.mxu0 0.0
        %996 = vmatpush2.xpose.msra.mxu0 0.0
        %997 = vmatprep.subr.mxu0 0.0
        %998 = vmatpush2.xpose.msra.mxu0 0.0
        %999 = vmatprep.subr.mxu0 0.0
        %1000 = vmatpush2.xpose.msra.mxu0 0.0
        %1001 = vmatprep.subr.mxu0 0.0
        %1002 = vmatpush2.xpose.msra.mxu0 0.0
        %1003 = vmatprep.subr.mxu0 0.0
        %1004 = vmatpush2.xpose.msra.mxu0 0.0
        %1005 = vmatprep.subr.mxu0 0.0
        %1006 = vmatpush2.xpose.msra.mxu0 0.0
        %1007 = vmatprep.subr.mxu0 0.0
        %1008 = vmatpush2.xpose.msra.mxu0 0.0
        %1009 = vmatprep.subr.mxu0 0.0
        %1010 = vmatpush2.xpose.msra.mxu0 0.0
        %1011 = vmatprep.subr.mxu0 0.0
        %1012 = vmatpush2.xpose.msra.mxu0 0.0
        %1013 = vmatprep.subr.mxu0 0.0
        %1014 = vmatpush2.xpose.msra.mxu0 0.0
        %1015 = vmatprep.subr.mxu0 0.0
        %1016 = vmatpush2.xpose.msra.mxu0 0.0
        %1017 = vmatprep.subr.mxu0 0.0
        %1018 = vmatpush2.xpose.msra.mxu0 0.0
        %1019 = vmatprep.subr.mxu0 0.0
        %1020 = vmatpush2.xpose.msra.mxu0 0.0
        %1021 = vmatprep.mubr.f32.mxu0 0.0
        %1022 = vmatmul.mubr.f32.gmra.mxu0 %v949
        %v1023 = vpop.f32.mrf.mxu0
        %v1024 = vadd.f32 0.0, %v1023
        %v1025 = vpop.f32.mrf.mxu0
        %1026 = vmatprep.mubr.f32.mxu0 0.0
        %1027 = vmatmul.mubr.f32.gmra.mxu0 %v951
        %v1028 = vpop.f32.mrf.mxu0
        %v1029 = vadd.f32 0.0, %v1028
        %v1030 = vpop.f32.mrf.mxu0
        %1031 = vdwg.mxu0
        %v1032 = vsel %vm618, %v1024, -inf
        %1033 = vmax.xlane.f32.xlu0 %v1032
        %v1034 = vpop.xlane.xlu0 %1033
        %v1035 = vsel %vm618, %v1029, -inf
        %1036 = vmax.xlane.f32.xlu0 %v1035
        %v1037 = vpop.xlane.xlu0 %1036
        %v1038 = vsub.f32 %v1024, %v1034
        %v1039 = vsub.f32 %v1029, %v1037
        %v1040 = vmul.f32 %v1038, 1.442695
        %v1041 = vpow.pop %v1040
        %v1042 = vmul.f32 %v1039, 1.442695
        %v1043 = vpow.pop %v1042
        %v1044 = vsel %vm618, %v1041, 0.0
        %1045 = vadd.xlane.f32.xlu0 %v1044
        %v1046 = vpop.xlane.xlu0 %1045
        %v1047 = vsel %vm618, %v1043, 0.0
        %1048 = vadd.xlane.f32.xlu0 %v1047
        %v1049 = vpop.xlane.xlu0 %1048
        %1050 = vrot.lane.b32.xlu0 %v522, 80
        %v1051 = vpop.permute.xlu0 %1050
        %1052 = vrot.lane.b32.xlu0 %v527, 80
        %v1053 = vpop.permute.xlu0 %1052
        %v1057 = vsel %vm618, %v1041, 0
        %v1060 = vsel %vm618, %v1043, 0
        %1062 = vmatprep.subr.mxu0 0.0
        %1063 = vmatpush1.msra.mxu0 0.0
        %1064 = vmatprep.subr.mxu0 0.0
        %1065 = vmatpush1.msra.mxu0 0.0
        %1066 = vmatprep.subr.mxu0 0.0
        %1067 = vmatpush1.msra.mxu0 0.0
        %1068 = vmatprep.subr.mxu0 0.0
        %1069 = vmatpush1.msra.mxu0 0.0
        %1070 = vmatprep.subr.mxu0 0.0
        %1071 = vmatpush1.msra.mxu0 0.0
        %1072 = vmatprep.subr.mxu0 0.0
        %1073 = vmatpush1.msra.mxu0 0.0
        %1074 = vmatprep.subr.mxu0 0.0
        %1075 = vmatpush1.msra.mxu0 0.0
        %1076 = vmatprep.subr.mxu0 0.0
        %1077 = vmatpush1.msra.mxu0 0.0
        %1078 = vmatprep.subr.mxu0 0.0
        %1079 = vmatpush1.msra.mxu0 0.0
        %1080 = vmatprep.subr.mxu0 0.0
        %1081 = vmatpush1.msra.mxu0 0.0
        %1082 = vmatprep.subr.mxu0 0.0
        %1083 = vmatpush1.msra.mxu0 0.0
        %1084 = vmatprep.subr.mxu0 0.0
        %1085 = vmatpush1.msra.mxu0 0.0
        %1086 = vmatprep.subr.mxu0 0.0
        %1087 = vmatpush1.msra.mxu0 0.0
        %1088 = vmatprep.subr.mxu0 0.0
        %1089 = vmatpush1.msra.mxu0 0.0
        %1090 = vmatprep.subr.mxu0 0.0
        %1091 = vmatpush1.msra.mxu0 %v1053
        %1092 = vmatprep.subr.mxu0 0.0
        %1093 = vmatpush1.msra.mxu0 %v1051
        %1094 = vmatprep.subr.mxu0 0.0
        %1095 = vmatpush2.msra.mxu0 0.0
        %1096 = vmatprep.subr.mxu0 0.0
        %1097 = vmatpush2.msra.mxu0 0.0
        %1098 = vmatprep.subr.mxu0 0.0
        %1099 = vmatpush2.msra.mxu0 0.0
        %1100 = vmatprep.subr.mxu0 0.0
        %1101 = vmatpush2.msra.mxu0 0.0
        %1102 = vmatprep.subr.mxu0 0.0
        %1103 = vmatpush2.msra.mxu0 0.0
        %1104 = vmatprep.subr.mxu0 0.0
        %1105 = vmatpush2.msra.mxu0 0.0
        %1106 = vmatprep.subr.mxu0 0.0
        %1107 = vmatpush2.msra.mxu0 0.0
        %1108 = vmatprep.subr.mxu0 0.0
        %1109 = vmatpush2.msra.mxu0 0.0
        %1110 = vmatprep.subr.mxu0 0.0
        %1111 = vmatpush2.msra.mxu0 0.0
        %1112 = vmatprep.subr.mxu0 0.0
        %1113 = vmatpush2.msra.mxu0 0.0
        %1114 = vmatprep.subr.mxu0 0.0
        %1115 = vmatpush2.msra.mxu0 0.0
        %1116 = vmatprep.subr.mxu0 0.0
        %1117 = vmatpush2.msra.mxu0 0.0
        %1118 = vmatprep.subr.mxu0 0.0
        %1119 = vmatpush2.msra.mxu0 0.0
        %1120 = vmatprep.subr.mxu0 0.0
        %1121 = vmatpush2.msra.mxu0 0.0
        %1122 = vmatprep.subr.mxu0 0.0
        %1123 = vmatpush2.msra.mxu0 0.0
        %1124 = vmatprep.subr.mxu0 0.0
        %1125 = vmatpush2.msra.mxu0 0.0
        %1126 = vmatprep.mubr.f32.mxu0 0.0
        %1127 = vmatmul.mubr.f32.gmra.mxu0 %v1057
        %v1128 = vpop.f32.mrf.mxu0
        %v1129 = vadd.f32 0.0, %v1128
        %v1130 = vpop.f32.mrf.mxu0
        %1131 = vmatprep.mubr.f32.mxu0 0.0
        %1132 = vmatmul.mubr.f32.gmra.mxu0 %v1060
        %v1133 = vpop.f32.mrf.mxu0
        %v1134 = vadd.f32 0.0, %v1133
        %v1135 = vpop.f32.mrf.mxu0
        %1136 = vdwg.mxu0
        %v1137 = vrcp.pop %v1046
        %v1138 = vrcp.pop %v1049
        %v1139 = vmul.f32 %v1129, %v1137
        %v1140 = vmul.f32 %v1134, %v1138
        %1143 = vrot.lane.b32.xlu0 %v1139, 16
        %v1144 = vpop.permute.xlu0 %1143
        %1145 = vrot.lane.b32.xlu0 %v1140, 16
        %v1146 = vpop.permute.xlu0 %1145
        %vm1149 = vcmask 195712
        %1150 = vst.msk [vmem:[#allocation2] sm:$0xff] %vm1149, %v1144
        %1151 = vst.msk [vmem:[#allocation2 + $0x8] sm:$0xff] %vm1149, %v1146
        %1152 = vrot.lane.b32.xlu0 %v443, 104
        %v1153 = vpop.permute.xlu0 %1152
        %1154 = vrot.lane.b32.xlu0 %v444, 104
        %v1155 = vpop.permute.xlu0 %1154
        %1156 = vrot.lane.b32.xlu0 %v522, 104
        %v1157 = vpop.permute.xlu0 %1156
        %1158 = vrot.lane.b32.xlu0 %v527, 104
        %v1159 = vpop.permute.xlu0 %1158
        %v1160 = vsel %vm530, %v1153, 0
        %v1162 = vsel %vm530, %v1155, 0
        %v1164 = vsel %vm530, %v1157, 0
        %v1166 = vsel %vm530, %v1159, 0
        %1168 = vmatprep.subr.mxu0 0.0
        %1169 = vmatpush1.xpose.msra.mxu0 0.0
        %1170 = vmatprep.subr.mxu0 0.0
        %1171 = vmatpush1.xpose.msra.mxu0 0.0
        %1172 = vmatprep.subr.mxu0 0.0
        %1173 = vmatpush1.xpose.msra.mxu0 0.0
        %1174 = vmatprep.subr.mxu0 0.0
        %1175 = vmatpush1.xpose.msra.mxu0 0.0
        %1176 = vmatprep.subr.mxu0 0.0
        %1177 = vmatpush1.xpose.msra.mxu0 0.0
        %1178 = vmatprep.subr.mxu0 0.0
        %1179 = vmatpush1.xpose.msra.mxu0 0.0
        %1180 = vmatprep.subr.mxu0 0.0
        %1181 = vmatpush1.xpose.msra.mxu0 0.0
        %1182 = vmatprep.subr.mxu0 0.0
        %1183 = vmatpush1.xpose.msra.mxu0 0.0
        %1184 = vmatprep.subr.mxu0 0.0
        %1185 = vmatpush1.xpose.msra.mxu0 0.0
        %1186 = vmatprep.subr.mxu0 0.0
        %1187 = vmatpush1.xpose.msra.mxu0 0.0
        %1188 = vmatprep.subr.mxu0 0.0
        %1189 = vmatpush1.xpose.msra.mxu0 0.0
        %1190 = vmatprep.subr.mxu0 0.0
        %1191 = vmatpush1.xpose.msra.mxu0 0.0
        %1192 = vmatprep.subr.mxu0 0.0
        %1193 = vmatpush1.xpose.msra.mxu0 0.0
        %1194 = vmatprep.subr.mxu0 0.0
        %1195 = vmatpush1.xpose.msra.mxu0 0.0
        %1196 = vmatprep.subr.mxu0 0.0
        %1197 = vmatpush1.xpose.msra.mxu0 %v1166
        %1198 = vmatprep.subr.mxu0 0.0
        %1199 = vmatpush1.xpose.msra.mxu0 %v1164
        %1200 = vmatprep.subr.mxu0 0.0
        %1201 = vmatpush2.xpose.msra.mxu0 0.0
        %1202 = vmatprep.subr.mxu0 0.0
        %1203 = vmatpush2.xpose.msra.mxu0 0.0
        %1204 = vmatprep.subr.mxu0 0.0
        %1205 = vmatpush2.xpose.msra.mxu0 0.0
        %1206 = vmatprep.subr.mxu0 0.0
        %1207 = vmatpush2.xpose.msra.mxu0 0.0
        %1208 = vmatprep.subr.mxu0 0.0
        %1209 = vmatpush2.xpose.msra.mxu0 0.0
        %1210 = vmatprep.subr.mxu0 0.0
        %1211 = vmatpush2.xpose.msra.mxu0 0.0
        %1212 = vmatprep.subr.mxu0 0.0
        %1213 = vmatpush2.xpose.msra.mxu0 0.0
        %1214 = vmatprep.subr.mxu0 0.0
        %1215 = vmatpush2.xpose.msra.mxu0 0.0
        %1216 = vmatprep.subr.mxu0 0.0
        %1217 = vmatpush2.xpose.msra.mxu0 0.0
        %1218 = vmatprep.subr.mxu0 0.0
        %1219 = vmatpush2.xpose.msra.mxu0 0.0
        %1220 = vmatprep.subr.mxu0 0.0
        %1221 = vmatpush2.xpose.msra.mxu0 0.0
        %1222 = vmatprep.subr.mxu0 0.0
        %1223 = vmatpush2.xpose.msra.mxu0 0.0
        %1224 = vmatprep.subr.mxu0 0.0
        %1225 = vmatpush2.xpose.msra.mxu0 0.0
        %1226 = vmatprep.subr.mxu0 0.0
        %1227 = vmatpush2.xpose.msra.mxu0 0.0
        %1228 = vmatprep.subr.mxu0 0.0
        %1229 = vmatpush2.xpose.msra.mxu0 0.0
        %1230 = vmatprep.subr.mxu0 0.0
        %1231 = vmatpush2.xpose.msra.mxu0 0.0
        %1232 = vmatprep.mubr.f32.mxu0 0.0
        %1233 = vmatmul.mubr.f32.gmra.mxu0 %v1160
        %v1234 = vpop.f32.mrf.mxu0
        %v1235 = vadd.f32 0.0, %v1234
        %v1236 = vpop.f32.mrf.mxu0
        %1237 = vmatprep.mubr.f32.mxu0 0.0
        %1238 = vmatmul.mubr.f32.gmra.mxu0 %v1162
        %v1239 = vpop.f32.mrf.mxu0
        %v1240 = vadd.f32 0.0, %v1239
        %v1241 = vpop.f32.mrf.mxu0
        %1242 = vdwg.mxu0
        %v1243 = vsel %vm618, %v1235, -inf
        %1244 = vmax.xlane.f32.xlu0 %v1243
        %v1245 = vpop.xlane.xlu0 %1244
        %v1246 = vsel %vm618, %v1240, -inf
        %1247 = vmax.xlane.f32.xlu0 %v1246
        %v1248 = vpop.xlane.xlu0 %1247
        %v1249 = vsub.f32 %v1235, %v1245
        %v1250 = vsub.f32 %v1240, %v1248
        %v1251 = vmul.f32 %v1249, 1.442695
        %v1252 = vpow.pop %v1251
        %v1253 = vmul.f32 %v1250, 1.442695
        %v1254 = vpow.pop %v1253
        %v1255 = vsel %vm618, %v1252, 0.0
        %1256 = vadd.xlane.f32.xlu0 %v1255
        %v1257 = vpop.xlane.xlu0 %1256
        %v1258 = vsel %vm618, %v1254, 0.0
        %1259 = vadd.xlane.f32.xlu0 %v1258
        %v1260 = vpop.xlane.xlu0 %1259
        %1261 = vrot.lane.b32.xlu0 %v522, 72
        %v1262 = vpop.permute.xlu0 %1261
        %1263 = vrot.lane.b32.xlu0 %v527, 72
        %v1264 = vpop.permute.xlu0 %1263
        %v1268 = vsel %vm618, %v1252, 0
        %v1271 = vsel %vm618, %v1254, 0
        %1273 = vmatprep.subr.mxu0 0.0
        %1274 = vmatpush1.msra.mxu0 0.0
        %1275 = vmatprep.subr.mxu0 0.0
        %1276 = vmatpush1.msra.mxu0 0.0
        %1277 = vmatprep.subr.mxu0 0.0
        %1278 = vmatpush1.msra.mxu0 0.0
        %1279 = vmatprep.subr.mxu0 0.0
        %1280 = vmatpush1.msra.mxu0 0.0
        %1281 = vmatprep.subr.mxu0 0.0
        %1282 = vmatpush1.msra.mxu0 0.0
        %1283 = vmatprep.subr.mxu0 0.0
        %1284 = vmatpush1.msra.mxu0 0.0
        %1285 = vmatprep.subr.mxu0 0.0
        %1286 = vmatpush1.msra.mxu0 0.0
        %1287 = vmatprep.subr.mxu0 0.0
        %1288 = vmatpush1.msra.mxu0 0.0
        %1289 = vmatprep.subr.mxu0 0.0
        %1290 = vmatpush1.msra.mxu0 0.0
        %1291 = vmatprep.subr.mxu0 0.0
        %1292 = vmatpush1.msra.mxu0 0.0
        %1293 = vmatprep.subr.mxu0 0.0
        %1294 = vmatpush1.msra.mxu0 0.0
        %1295 = vmatprep.subr.mxu0 0.0
        %1296 = vmatpush1.msra.mxu0 0.0
        %1297 = vmatprep.subr.mxu0 0.0
        %1298 = vmatpush1.msra.mxu0 0.0
        %1299 = vmatprep.subr.mxu0 0.0
        %1300 = vmatpush1.msra.mxu0 0.0
        %1301 = vmatprep.subr.mxu0 0.0
        %1302 = vmatpush1.msra.mxu0 %v1264
        %1303 = vmatprep.subr.mxu0 0.0
        %1304 = vmatpush1.msra.mxu0 %v1262
        %1305 = vmatprep.subr.mxu0 0.0
        %1306 = vmatpush2.msra.mxu0 0.0
        %1307 = vmatprep.subr.mxu0 0.0
        %1308 = vmatpush2.msra.mxu0 0.0
        %1309 = vmatprep.subr.mxu0 0.0
        %1310 = vmatpush2.msra.mxu0 0.0
        %1311 = vmatprep.subr.mxu0 0.0
        %1312 = vmatpush2.msra.mxu0 0.0
        %1313 = vmatprep.subr.mxu0 0.0
        %1314 = vmatpush2.msra.mxu0 0.0
        %1315 = vmatprep.subr.mxu0 0.0
        %1316 = vmatpush2.msra.mxu0 0.0
        %1317 = vmatprep.subr.mxu0 0.0
        %1318 = vmatpush2.msra.mxu0 0.0
        %1319 = vmatprep.subr.mxu0 0.0
        %1320 = vmatpush2.msra.mxu0 0.0
        %1321 = vmatprep.subr.mxu0 0.0
        %1322 = vmatpush2.msra.mxu0 0.0
        %1323 = vmatprep.subr.mxu0 0.0
        %1324 = vmatpush2.msra.mxu0 0.0
        %1325 = vmatprep.subr.mxu0 0.0
        %1326 = vmatpush2.msra.mxu0 0.0
        %1327 = vmatprep.subr.mxu0 0.0
        %1328 = vmatpush2.msra.mxu0 0.0
        %1329 = vmatprep.subr.mxu0 0.0
        %1330 = vmatpush2.msra.mxu0 0.0
        %1331 = vmatprep.subr.mxu0 0.0
        %1332 = vmatpush2.msra.mxu0 0.0
        %1333 = vmatprep.subr.mxu0 0.0
        %1334 = vmatpush2.msra.mxu0 0.0
        %1335 = vmatprep.subr.mxu0 0.0
        %1336 = vmatpush2.msra.mxu0 0.0
        %1337 = vmatprep.mubr.f32.mxu0 0.0
        %1338 = vmatmul.mubr.f32.gmra.mxu0 %v1268
        %v1339 = vpop.f32.mrf.mxu0
        %v1340 = vadd.f32 0.0, %v1339
        %v1341 = vpop.f32.mrf.mxu0
        %1342 = vmatprep.mubr.f32.mxu0 0.0
        %1343 = vmatmul.mubr.f32.gmra.mxu0 %v1271
        %v1344 = vpop.f32.mrf.mxu0
        %v1345 = vadd.f32 0.0, %v1344
        %v1346 = vpop.f32.mrf.mxu0
        %1347 = vdwg.mxu0
        %v1348 = vrcp.pop %v1257
        %v1349 = vrcp.pop %v1260
        %v1350 = vmul.f32 %v1340, %v1348
        %v1351 = vmul.f32 %v1345, %v1349
        %1354 = vrot.lane.b32.xlu0 %v1350, 24
        %v1355 = vpop.permute.xlu0 %1354
        %1356 = vrot.lane.b32.xlu0 %v1351, 24
        %v1357 = vpop.permute.xlu0 %1356
        %vm1360 = vcmask 261312
        %1361 = vst.msk [vmem:[#allocation2] sm:$0xff] %vm1360, %v1355
        %1362 = vst.msk [vmem:[#allocation2 + $0x8] sm:$0xff] %vm1360, %v1357
        %v1363 = vld [vmem:[#allocation2] sm:$0xff]
        %v1364 = vld [vmem:[#allocation2 + $0x8] sm:$0xff]
        %v1365 = vld [vmem:[#allocation11] sm:$0xff]
        %v1366 = vld [vmem:[#allocation11 + $0x8] sm:$0xff]
        %v1367 = vld [vmem:[#allocation11 + $0x10] sm:$0xff]
        %v1368 = vld [vmem:[#allocation11 + $0x18] sm:$0xff]
        %v1369 = vld [vmem:[%s5] sm:$0x1]
        %v1371 = vlaneseq
        %v1372 = vshrl.u32 %v1371, 7
        %v1373 = vsub.s32 0, %v1372
        %v1374 = vrot.slane %v1369, %v1373
        %v1377 = vsel %vm361, %v1363, 0
        %v1380 = vsel %vm361, %v1364, 0
        %1382 = vmatprep.subr.mxu0 0.0
        %1383 = vmatpush1.msra.mxu0 0.0
        %1384 = vmatprep.subr.mxu0 0.0
        %1385 = vmatpush1.msra.mxu0 0.0
        %1386 = vmatprep.subr.mxu0 0.0
        %1387 = vmatpush1.msra.mxu0 0.0
        %1388 = vmatprep.subr.mxu0 0.0
        %1389 = vmatpush1.msra.mxu0 0.0
        %1390 = vmatprep.subr.mxu0 0.0
        %1391 = vmatpush1.msra.mxu0 0.0
        %1392 = vmatprep.subr.mxu0 0.0
        %1393 = vmatpush1.msra.mxu0 0.0
        %1394 = vmatprep.subr.mxu0 0.0
        %1395 = vmatpush1.msra.mxu0 0.0
        %1396 = vmatprep.subr.mxu0 0.0
        %1397 = vmatpush1.msra.mxu0 0.0
        %1398 = vmatprep.subr.mxu0 0.0
        %1399 = vmatpush1.msra.mxu0 0.0
        %1400 = vmatprep.subr.mxu0 0.0
        %1401 = vmatpush1.msra.mxu0 0.0
        %1402 = vmatprep.subr.mxu0 0.0
        %1403 = vmatpush1.msra.mxu0 0.0
        %1404 = vmatprep.subr.mxu0 0.0
        %1405 = vmatpush1.msra.mxu0 0.0
        %1406 = vmatprep.subr.mxu0 0.0
        %1407 = vmatpush1.msra.mxu0 %v1368
        %1408 = vmatprep.subr.mxu0 0.0
        %1409 = vmatpush1.msra.mxu0 %v1367
        %1410 = vmatprep.subr.mxu0 0.0
        %1411 = vmatpush1.msra.mxu0 %v1366
        %1412 = vmatprep.subr.mxu0 0.0
        %1413 = vmatpush1.msra.mxu0 %v1365
        %1414 = vmatprep.subr.mxu0 0.0
        %1415 = vmatpush2.msra.mxu0 0.0
        %1416 = vmatprep.subr.mxu0 0.0
        %1417 = vmatpush2.msra.mxu0 0.0
        %1418 = vmatprep.subr.mxu0 0.0
        %1419 = vmatpush2.msra.mxu0 0.0
        %1420 = vmatprep.subr.mxu0 0.0
        %1421 = vmatpush2.msra.mxu0 0.0
        %1422 = vmatprep.subr.mxu0 0.0
        %1423 = vmatpush2.msra.mxu0 0.0
        %1424 = vmatprep.subr.mxu0 0.0
        %1425 = vmatpush2.msra.mxu0 0.0
        %1426 = vmatprep.subr.mxu0 0.0
        %1427 = vmatpush2.msra.mxu0 0.0
        %1428 = vmatprep.subr.mxu0 0.0
        %1429 = vmatpush2.msra.mxu0 0.0
        %1430 = vmatprep.subr.mxu0 0.0
        %1431 = vmatpush2.msra.mxu0 0.0
        %1432 = vmatprep.subr.mxu0 0.0
        %1433 = vmatpush2.msra.mxu0 0.0
        %1434 = vmatprep.subr.mxu0 0.0
        %1435 = vmatpush2.msra.mxu0 0.0
        %1436 = vmatprep.subr.mxu0 0.0
        %1437 = vmatpush2.msra.mxu0 0.0
        %1438 = vmatprep.subr.mxu0 0.0
        %1439 = vmatpush2.msra.mxu0 0.0
        %1440 = vmatprep.subr.mxu0 0.0
        %1441 = vmatpush2.msra.mxu0 0.0
        %1442 = vmatprep.subr.mxu0 0.0
        %1443 = vmatpush2.msra.mxu0 0.0
        %1444 = vmatprep.subr.mxu0 0.0
        %1445 = vmatpush2.msra.mxu0 0.0
        %1446 = vmatprep.mubr.f32.mxu0 0.0
        %1447 = vmatmul.mubr.f32.gmra.mxu0 %v1377
        %v1448 = vpop.f32.mrf.mxu0
        %v1449 = vadd.f32 %v1374, %v1448
        %v1450 = vpop.f32.mrf.mxu0
        %1451 = vmatprep.mubr.f32.mxu0 0.0
        %1452 = vmatmul.mubr.f32.gmra.mxu0 %v1380
        %v1453 = vpop.f32.mrf.mxu0
        %v1454 = vadd.f32 %v1374, %v1453
        %v1455 = vpop.f32.mrf.mxu0
        %1456 = vdwg.mxu0
        %1457 = vst.msk [vmem:[%s352] sm:$0xff] %vm361, %v1449
        %1458 = vst.msk [vmem:[%s352 + $0x8] sm:$0xff] %vm361, %v1454
        %s1459 = sand.u32 %s171, 1
        %s1460 = scalar_lea.sflag [#allocation5], %s1459
        %s1461 = sand.u32 %s171, 1
        %s1462 = smul.addr %s1461, 16
        %s1463 = scalar_lea.vmem [#allocation12], %s1462
        // Predicated region
        $region65: #{tpu_custom_call.1} parent=43 // pred_check
          %p1464 = pneg %p181
        $region66: #{tpu_custom_call.1} parent=43 // pred_check_branch
          %1466 = sbr.rel (%p1464) target = $region68
        $region67: #{tpu_custom_call.1} parent=43 // pred_region
          %s1468 = ssub.s32 256, 256
          %1469 = vsyncadd %s1460, %s1468
          %s1470 = smul.addr %s27, 2
          %s1471 = smul.addr %s1470, 128
          %s1472 = scalar_lea.hbm %s6, %s1471
          %s1473 = sshll.u32 %s1463, 4
          %s1474 = int_to_ptr.vmem [resolvable:$true] %s1473
          %1479 = dma.vmem_to_hbm [thread:$0]  %s1474, 256, %s1472, %s1460, 128, 128, 8
        $region68: #{tpu_custom_call.1} parent=43 // pred_fallthru
          _
      $region44: #{tpu_custom_call.1} parent=5 // pred_fallthru
        _
      %p1480 = scmp.le.s32.totalorder 2, %s22
      // Predicated region
      $region69: #{tpu_custom_call.1} parent=5 // pred_check
        %p1481 = pneg %p1480
      $region70: #{tpu_custom_call.1} parent=5 // pred_check_branch
        %1483 = sbr.rel (%p1481) target = $region72
      $region71: #{tpu_custom_call.1} parent=5 // pred_region
        %s1484 = ssub.s32 %s22, 2
        // Predicated region
        $region73: #{tpu_custom_call.1} parent=71 // pred_check
          %p1485 = pneg %p187
        $region74: #{tpu_custom_call.1} parent=71 // pred_check_branch
          %1487 = sbr.rel (%p1485) target = $region76
        $region75: #{tpu_custom_call.1} parent=71 // pred_region
          %s1488 = sand.u32 %s172, 1
          %s1489 = scalar_lea.sflag [#allocation5], %s1488
          %s1490 = sand.u32 %s172, 1
          %s1491 = smul.addr %s1490, 16
          %s1492 = scalar_lea.vmem [#allocation12], %s1491
          %1493 = dma.done %s1489, 256
        $region76: #{tpu_custom_call.1} parent=71 // pred_fallthru
          _
      $region72: #{tpu_custom_call.1} parent=5 // pred_fallthru
        _
    $region6: #{tpu_custom_call.1} parent=1 // loop_footer
      %s26 = sadd.s32 1, %s22
    $region7: #{tpu_custom_call.1} parent=1 // loop_footer_branch
      %21 = sbr.rel target = $region3
    $region8: #{tpu_custom_call.1} parent=1 // loop_exit
      _
    %1494 = vsyncpa [#allocation4], 1
    %s1495 = scalar_lea.sflag [#allocation4], 1
    %1496 = vsyncpa %s1495, 1
    %1497 = vsyncpa [#allocation7], 1
    %s1498 = scalar_lea.sflag [#allocation7], 1
    %1499 = vsyncpa %s1498, 1
    %1500 = vsyncpa [#allocation10], 1
    %1501 = vsyncpa [#allocation5], 1
    %s1502 = scalar_lea.sflag [#allocation5], 1
    %1503 = vsyncpa %s1502, 1

</llo_original>
